<compile_context>
chip_gen: v6e
topology: v6e:2x2x1
jax: 0.10.0
libtpu: 0.0.40
codegen_flags: <defaults>
</compile_context>

<pallas_src>
import jax
import jax.numpy as jnp
from jax import lax
from jax.experimental import pallas as pl
from jax.experimental.pallas import tpu as pltpu

EPS = 1e-5                      # nn.BatchNorm2d default
LANES = 128                     # pad K and Cout to multiples of this
MATMUL_DTYPE = jnp.bfloat16     # MXU operand dtype (f32 accumulation)
VMEM_LIMIT = 32 * 1024 * 1024   # explicit scoped-VMEM budget (safe on v5e/v6e/v7x)


def _round_up(x, m):
    return ((x + m - 1) // m) * m


def _compiler_params():
    return pltpu.CompilerParams(
        dimension_semantics=("parallel",),
        vmem_limit_bytes=VMEM_LIMIT,
    )


# ---------------------------------------------------------------------------
# Pallas kernels
# ---------------------------------------------------------------------------
def _mm_stats_kernel(p_ref, w_ref, y_ref, stats_ref):
    """y = p @ w (bf16 operands, f32 accumulation) + per-tile sum / sum-of-squares."""
    y = jnp.dot(p_ref[...], w_ref[...], preferred_element_type=jnp.float32)
    y_ref[...] = y
    s = jnp.sum(y, axis=0, keepdims=True)          # [1, C]  (XLU reduce)
    ss = jnp.sum(y * y, axis=0, keepdims=True)     # [1, C]
    c = y.shape[1]
    row = lax.broadcasted_iota(jnp.int32, (8, c), 0)
    stats = jnp.where(row == 0, s, 0.0) + jnp.where(row == 1, ss, 0.0)   # [8, C]
    stats_ref[...] = stats[None]                    # [1, 8, C]


def _bn_split_relu_kernel(y_ref, scale_ref, shift_ref, h_ref, r_ref):
    """Normalize a fused [conv1 | conv3] slab; relu only the conv1 half."""
    cp = h_ref.shape[1]
    out = y_ref[...] * scale_ref[...] + shift_ref[...]
    h_ref[...] = jnp.maximum(out[:, :cp], 0.0)      # conv1 -> bn1 -> relu
    r_ref[...] = out[:, cp:]                        # conv3 -> bn3 (no relu)


def _bn_relu_kernel(y_ref, scale_ref, shift_ref, o_ref):
    o_ref[...] = jnp.maximum(y_ref[...] * scale_ref[...] + shift_ref[...], 0.0)


def _bn_add_relu_kernel(y_ref, scale_ref, shift_ref, res_ref, o_ref):
    out = y_ref[...] * scale_ref[...] + shift_ref[...] + res_ref[...]
    o_ref[...] = jnp.maximum(out, 0.0)


# ---------------------------------------------------------------------------
# Gridded pallas_call wrappers
# ---------------------------------------------------------------------------
def _matmul_with_stats(patches_p, w_p, tm):
    mp, kp = patches_p.shape
    cp = w_p.shape[1]
    nt = mp // tm
    return pl.pallas_call(
        _mm_stats_kernel,
        grid=(nt,),
        in_specs=[
            pl.BlockSpec((tm, kp), lambda i: (i, 0)),
            pl.BlockSpec((kp, cp), lambda i: (0, 0)),   # weights stay resident
        ],
        out_specs=(
            pl.BlockSpec((tm, cp), lambda i: (i, 0)),
            pl.BlockSpec((1, 8, cp), lambda i: (i, 0, 0)),
        ),
        out_shape=(
            jax.ShapeDtypeStruct((mp, cp), jnp.float32),
            jax.ShapeDtypeStruct((nt, 8, cp), jnp.float32),
        ),
        compiler_params=_compiler_params(),
    )(patches_p, w_p)


def _bn_scale_shift(stats, m_real, gamma_p, beta_p):
    """Fold per-tile partial sums into per-channel BN scale/shift (biased var)."""
    total = jnp.sum(stats, axis=0)                     # [8, C]
    mean = total[0] / m_real
    var = jnp.maximum(total[1] / m_real - mean * mean, 0.0)
    inv = gamma_p * lax.rsqrt(var + EPS)
    scale = inv.reshape(1, -1).astype(jnp.float32)
    shift = (beta_p - mean * inv).reshape(1, -1).astype(jnp.float32)
    return scale, shift


def _bn_apply_split(y_p, scale, shift, tm, cp):
    mp, ctot = y_p.shape
    nt = mp // tm
    return pl.pallas_call(
        _bn_split_relu_kernel,
        grid=(nt,),
        in_specs=[
            pl.BlockSpec((tm, ctot), lambda i: (i, 0)),
            pl.BlockSpec((1, ctot), lambda i: (0, 0)),
            pl.BlockSpec((1, ctot), lambda i: (0, 0)),
        ],
        out_specs=(
            pl.BlockSpec((tm, cp), lambda i: (i, 0)),
            pl.BlockSpec((tm, cp), lambda i: (i, 0)),
        ),
        out_shape=(
            jax.ShapeDtypeStruct((mp, cp), jnp.float32),
            jax.ShapeDtypeStruct((mp, cp), jnp.float32),
        ),
        compiler_params=_compiler_params(),
    )(y_p, scale, shift)


def _bn_apply_relu(y_p, scale, shift, tm):
    mp, cp = y_p.shape
    nt = mp // tm
    return pl.pallas_call(
        _bn_relu_kernel,
        grid=(nt,),
        in_specs=[
            pl.BlockSpec((tm, cp), lambda i: (i, 0)),
            pl.BlockSpec((1, cp), lambda i: (0, 0)),
            pl.BlockSpec((1, cp), lambda i: (0, 0)),
        ],
        out_specs=pl.BlockSpec((tm, cp), lambda i: (i, 0)),
        out_shape=jax.ShapeDtypeStruct((mp, cp), jnp.float32),
        compiler_params=_compiler_params(),
    )(y_p, scale, shift)


def _bn_apply_add_relu(y_p, scale, shift, res_p, tm):
    mp, cp = y_p.shape
    nt = mp // tm
    return pl.pallas_call(
        _bn_add_relu_kernel,
        grid=(nt,),
        in_specs=[
            pl.BlockSpec((tm, cp), lambda i: (i, 0)),
            pl.BlockSpec((1, cp), lambda i: (0, 0)),
            pl.BlockSpec((1, cp), lambda i: (0, 0)),
            pl.BlockSpec((tm, cp), lambda i: (i, 0)),
        ],
        out_specs=pl.BlockSpec((tm, cp), lambda i: (i, 0)),
        out_shape=jax.ShapeDtypeStruct((mp, cp), jnp.float32),
        compiler_params=_compiler_params(),
    )(y_p, scale, shift, res_p)


# ---------------------------------------------------------------------------
# Glue: im2col, weight reshape, padding, parameter init, module forward
# ---------------------------------------------------------------------------
def _im2col(x_nhwc, k, stride, pad):
    n, h, w, c = x_nhwc.shape
    ho = (h + 2 * pad - k) // stride + 1
    wo = (w + 2 * pad - k) // stride + 1
    xp = jnp.pad(x_nhwc, ((0, 0), (pad, pad), (pad, pad), (0, 0)))
    cols = []
    for di in range(k):
        for dj in range(k):
            cols.append(
                xp[:, di:di + stride * ho:stride, dj:dj + stride * wo:stride, :])
    cols = jnp.stack(cols, axis=3)                   # [n, ho, wo, k*k, c]
    return cols.reshape(n * ho * wo, k * k * c), (n, ho, wo)


def _w_to_mat(w):  # [cout, cin, kh, kw] -> [(kh*kw*cin), cout], matches im2col col order
    return jnp.transpose(w, (2, 3, 1, 0)).reshape(-1, w.shape[0])


def _pad2d(a, rows, cols, dtype=None):
    out = jnp.pad(a, ((0, rows - a.shape[0]), (0, cols - a.shape[1])))
    return out if dtype is None else out.astype(dtype)


def _pad1d(v, length):
    return jnp.pad(v.astype(jnp.float32), (0, length - v.shape[0]))


def init_res2d_params(key, cin, cout, k=3, stride=2):
    keys = jax.random.split(key, 6)

    def conv_init(kw, kb, ci):
        fan_in = ci * k * k
        bound = 1.0 / jnp.sqrt(jnp.float32(fan_in))
        w = jax.random.uniform(kw, (cout, ci, k, k), jnp.float32, -bound, bound)
        b = jax.random.uniform(kb, (cout,), jnp.float32, -bound, bound)
        return w, b

    p = {}
    p["w1"], p["b1"] = conv_init(keys[0], keys[1], cin)
    p["w2"], p["b2"] = conv_init(keys[2], keys[3], cout)
    p["w3"], p["b3"] = conv_init(keys[4], keys[5], cin)
    for i in ("1", "2", "3"):
        p["g" + i] = jnp.ones((cout,), jnp.float32)    # PyTorch BN init: gamma=1
        p["be" + i] = jnp.zeros((cout,), jnp.float32)  # PyTorch BN init: beta=0
    return p


def res2d_forward(x_nchw, params, *, k=3, stride=2):
    cin = x_nchw.shape[1]
    cout = params["w1"].shape[0]
    diff = (stride != 1) or (cin != cout)
    pad = k // 2
    cp = _round_up(cout, LANES)

    x = jnp.transpose(x_nchw, (0, 2, 3, 1)).astype(jnp.float32)   # NHWC

    # --- shared im2col for the strided convs (conv_1 and conv_3) ---
    p1, (n, ho, wo) = _im2col(x, k, stride, pad)
    m = p1.shape[0]
    k1p = _round_up(p1.shape[1], LANES)

    tm = 512 if m > 512 else _round_up(m, 8)
    mp = _round_up(m, tm)

    p1_p = _pad2d(p1, mp, k1p, MATMUL_DTYPE)

    # NOTE: conv bias is dropped on purpose — it cancels exactly in training-mode BN.
    if diff:
        # conv_1 and conv_3 fused: one LHS, concatenated [K, 2*Cp] weights.
        w13 = jnp.concatenate(
            [_pad2d(_w_to_mat(params["w1"]), k1p, cp),
             _pad2d(_w_to_mat(params["w3"]), k1p, cp)], axis=1).astype(MATMUL_DTYPE)
        g13 = jnp.concatenate([_pad1d(params["g1"], cp), _pad1d(params["g3"], cp)])
        b13 = jnp.concatenate([_pad1d(params["be1"], cp), _pad1d(params["be3"], cp)])

        y13, stats13 = _matmul_with_stats(p1_p, w13, tm)
        scale13, shift13 = _bn_scale_shift(stats13, m, g13, b13)
        h1_p, res_p = _bn_apply_split(y13, scale13, shift13, tm, cp)
    else:
        w1p = _pad2d(_w_to_mat(params["w1"]), k1p, cp, MATMUL_DTYPE)
        y1, stats1 = _matmul_with_stats(p1_p, w1p, tm)
        scale1, shift1 = _bn_scale_shift(stats1, m, _pad1d(params["g1"], cp),
                                         _pad1d(params["be1"], cp))
        h1_p = _bn_apply_relu(y1, scale1, shift1, tm)
        # identity shortcut: stride == 1 and cin == cout, rows line up 1:1.
        res_p = _pad2d(x.reshape(m, cout), mp, cp)

    # --- conv_2 (stride 1) on h1, then bn_2 + residual add + relu (fused) ---
    h1 = h1_p[:m, :cout].reshape(n, ho, wo, cout)
    p2, _ = _im2col(h1, k, 1, pad)
    k2p = _round_up(p2.shape[1], LANES)
    p2_p = _pad2d(p2, mp, k2p, MATMUL_DTYPE)
    w2p = _pad2d(_w_to_mat(params["w2"]), k2p, cp, MATMUL_DTYPE)

    y2, stats2 = _matmul_with_stats(p2_p, w2p, tm)
    scale2, shift2 = _bn_scale_shift(stats2, m, _pad1d(params["g2"], cp),
                                     _pad1d(params["be2"], cp))
    out_p = _bn_apply_add_relu(y2, scale2, shift2, res_p, tm)

    out = out_p[:m, :cout].reshape(n, ho, wo, cout)
    return jnp.transpose(out, (0, 3, 1, 2))   # back to NCHW


# ---------------------------------------------------------------------------
# Pure-JAX f32 reference (for correctness check only)
# ---------------------------------------------------------------------------
def _ref_forward(x_nchw, params, *, k=3, stride=2):
    pad = k // 2

    def conv(x, w, b, s):
        y = lax.conv_general_dilated(
            x, w, (s, s), [(pad, pad), (pad, pad)],
            dimension_numbers=("NCHW", "OIHW", "NCHW"))
        return y + b.reshape(1, -1, 1, 1)

    def bn(y, g, be):
        mean = jnp.mean(y, axis=(0, 2, 3), keepdims=True)
        var = jnp.mean((y - mean) ** 2, axis=(0, 2, 3), keepdims=True)
        return g.reshape(1, -1, 1, 1) * (y - mean) * lax.rsqrt(var + EPS) \
            + be.reshape(1, -1, 1, 1)

    h = jnp.maximum(bn(conv(x_nchw, params["w1"], params["b1"], stride),
                       params["g1"], params["be1"]), 0.0)
    out = bn(conv(h, params["w2"], params["b2"], 1), params["g2"], params["be2"])
    sc = bn(conv(x_nchw, params["w3"], params["b3"], stride),
            params["g3"], params["be3"])
    return jnp.maximum(sc + out, 0.0)


if __name__ == "__main__":
    key = jax.random.PRNGKey(0)
    kx, kp = jax.random.split(key)

    N, CIN, H, W = 2, 4, 16, 16
    COUT, K, STRIDE = 8, 3, 2

    x = jax.random.normal(kx, (N, CIN, H, W), jnp.float32)
    params = init_res2d_params(kp, CIN, COUT, K, STRIDE)

    fwd = jax.jit(lambda xx, pp: res2d_forward(xx, pp, k=K, stride=STRIDE))
    out = jax.block_until_ready(fwd(x, params))

    assert out.shape == (N, COUT, H // STRIDE, W // STRIDE), out.shape
    ref = _ref_forward(x, params, k=K, stride=STRIDE)
    # bf16 MXU operands vs. the f32 reference: use a looser tolerance; with f32
    # operands the kernel matches to ~1e-4.
    tol = 1e-4 if MATMUL_DTYPE == jnp.float32 else 1e-1
    if not jnp.allclose(out, ref, atol=tol, rtol=tol):
        raise AssertionError("Pallas Res_2d output does not match JAX reference")

    print("KERNEL_OK")
</pallas_src>

<mosaic_0001>
module attributes {stable_mosaic.version = 11 : i64} {
  func.func @_mm_stats_kernel(%arg0: i32, %arg1: memref<128x128xbf16, #tpu.memory_space<vmem>>, %arg2: memref<128x256xbf16, #tpu.memory_space<vmem>>, %arg3: memref<128x256xf32, #tpu.memory_space<vmem>>, %arg4: memref<1x8x256xf32, #tpu.memory_space<vmem>>) attributes {dimension_semantics = [#tpu.dimension_semantics<parallel>], iteration_bounds = array<i64: 1>, scalar_prefetch = 0 : i64, scratch_operands = 0 : i64, tpu.core_type = #tpu.core_type<tc>, window_params = [{transform_indices = @transform_0, window_bounds = array<i64: 128, 128>}, {pipeline_mode = #tpu.pipeline_mode<synchronous>, transform_indices = @transform_1, window_bounds = array<i64: 128, 256>}, {transform_indices = @transform_2, window_bounds = array<i64: 128, 256>}, {transform_indices = @transform_3, window_bounds = array<i64: 1, 8, 256>}]} {
    %c0 = arith.constant 0 : index
    %c0_0 = arith.constant 0 : index
    %0 = vector.load %arg1[%c0, %c0_0] : memref<128x128xbf16, #tpu.memory_space<vmem>>, vector<128x128xbf16>
    %c0_1 = arith.constant 0 : index
    %c0_2 = arith.constant 0 : index
    %1 = vector.load %arg2[%c0_1, %c0_2] : memref<128x256xbf16, #tpu.memory_space<vmem>>, vector<128x256xbf16>
    %cst = arith.constant dense<0.000000e+00> : vector<128x256xf32>
    %2 = tpu.matmul %0, %1, %cst {dimension_numbers = #tpu.dot_dimension_numbers<[1], [0], [0], [1], [0, 0, 1, 1], [], []>} : vector<128x128xbf16>, vector<128x256xbf16>, vector<128x256xf32> -> vector<128x256xf32>
    %c0_3 = arith.constant 0 : index
    %c0_4 = arith.constant 0 : index
    %3 = vector.load %arg3[%c0_3, %c0_4] : memref<128x256xf32, #tpu.memory_space<vmem>>, vector<128x256xf32>
    tpu.vector_store %arg3[%c0_3, %c0_4], %2 {strides = array<i32>} : memref<128x256xf32, #tpu.memory_space<vmem>>, vector<128x256xf32>,
    %cst_5 = arith.constant dense<0.000000e+00> : vector<256xf32>
    %4 = vector.multi_reduction <add>, %2, %cst_5 [0] : vector<128x256xf32> to vector<256xf32>
    %5 = vector.shape_cast %4 : vector<256xf32> to vector<1x256xf32>
    %6 = arith.mulf %2, %2 : vector<128x256xf32>
    %cst_6 = arith.constant dense<0.000000e+00> : vector<256xf32>
    %7 = vector.multi_reduction <add>, %6, %cst_6 [0] : vector<128x256xf32> to vector<256xf32>
    %8 = vector.shape_cast %7 : vector<256xf32> to vector<1x256xf32>
    %9 = tpu.iota {dimensions = array<i32: 0>} : vector<8x256xi32>
    %c0_i32 = arith.constant 0 : i32
    %10 = vector.broadcast %c0_i32 : i32 to vector<8x256xi32>
    %11 = arith.cmpi eq, %9, %10 : vector<8x256xi32>
    %cst_7 = arith.constant 0.000000e+00 : f32
    %12 = vector.shape_cast %5 : vector<1x256xf32> to vector<1x256xf32>
    %13 = vector.broadcast %12 : vector<1x256xf32> to vector<8x256xf32>
    %14 = vector.broadcast %cst_7 : f32 to vector<8x256xf32>
    %15 = arith.select %11, %13, %14 : vector<8x256xi1>, vector<8x256xf32>
    %c1_i32 = arith.constant 1 : i32
    %16 = vector.broadcast %c1_i32 : i32 to vector<8x256xi32>
    %17 = arith.cmpi eq, %9, %16 : vector<8x256xi32>
    %cst_8 = arith.constant 0.000000e+00 : f32
    %18 = vector.shape_cast %8 : vector<1x256xf32> to vector<1x256xf32>
    %19 = vector.broadcast %18 : vector<1x256xf32> to vector<8x256xf32>
    %20 = vector.broadcast %cst_8 : f32 to vector<8x256xf32>
    %21 = arith.select %17, %19, %20 : vector<8x256xi1>, vector<8x256xf32>
    %22 = arith.addf %15, %21 : vector<8x256xf32>
    %23 = vector.shape_cast %22 : vector<8x256xf32> to vector<1x8x256xf32>
    %c0_9 = arith.constant 0 : index
    %c0_10 = arith.constant 0 : index
    %c0_11 = arith.constant 0 : index
    %24 = vector.load %arg4[%c0_9, %c0_10, %c0_11] : memref<1x8x256xf32, #tpu.memory_space<vmem>>, vector<1x8x256xf32>
    tpu.vector_store %arg4[%c0_9, %c0_10, %c0_11], %23 {strides = array<i32>} : memref<1x8x256xf32, #tpu.memory_space<vmem>>, vector<1x8x256xf32>,
    return
  }
  func.func @transform_0(%arg0: i32) -> (i32, i32) {
    %c0_i32 = arith.constant 0 : i32
    %c0_i32_0 = arith.constant 0 : i32
    return %arg0, %c0_i32 : i32, i32
  }
  func.func @transform_1(%arg0: i32) -> (i32, i32) {
    %c0_i32 = arith.constant 0 : i32
    %c0_i32_0 = arith.constant 0 : i32
    %c0_i32_1 = arith.constant 0 : i32
    return %c0_i32, %c0_i32_0 : i32, i32
  }
  func.func @transform_2(%arg0: i32) -> (i32, i32) {
    %c0_i32 = arith.constant 0 : i32
    %c0_i32_0 = arith.constant 0 : i32
    return %arg0, %c0_i32 : i32, i32
  }
  func.func @transform_3(%arg0: i32) -> (i32, i32, i32) {
    %c0_i32 = arith.constant 0 : i32
    %c0_i32_0 = arith.constant 0 : i32
    %c0_i32_1 = arith.constant 0 : i32
    return %arg0, %c0_i32, %c0_i32_0 : i32, i32, i32
  }
}

module attributes {stable_mosaic.version = 11 : i64} {
  func.func @_bn_split_relu_kernel(%arg0: i32, %arg1: memref<128x256xf32, #tpu.memory_space<vmem>>, %arg2: memref<1x256xf32, #tpu.memory_space<vmem>>, %arg3: memref<1x256xf32, #tpu.memory_space<vmem>>, %arg4: memref<128x128xf32, #tpu.memory_space<vmem>>, %arg5: memref<128x128xf32, #tpu.memory_space<vmem>>) attributes {dimension_semantics = [#tpu.dimension_semantics<parallel>], iteration_bounds = array<i64: 1>, scalar_prefetch = 0 : i64, scratch_operands = 0 : i64, tpu.core_type = #tpu.core_type<tc>, window_params = [{transform_indices = @transform_0, window_bounds = array<i64: 128, 256>}, {pipeline_mode = #tpu.pipeline_mode<synchronous>, transform_indices = @transform_1, window_bounds = array<i64: 1, 256>}, {pipeline_mode = #tpu.pipeline_mode<synchronous>, transform_indices = @transform_2, window_bounds = array<i64: 1, 256>}, {transform_indices = @transform_3, window_bounds = array<i64: 128, 128>}, {transform_indices = @transform_4, window_bounds = array<i64: 128, 128>}]} {
    %c0 = arith.constant 0 : index
    %c0_0 = arith.constant 0 : index
    %0 = vector.load %arg1[%c0, %c0_0] : memref<128x256xf32, #tpu.memory_space<vmem>>, vector<128x256xf32>
    %c0_1 = arith.constant 0 : index
    %c0_2 = arith.constant 0 : index
    %1 = vector.load %arg2[%c0_1, %c0_2] : memref<1x256xf32, #tpu.memory_space<vmem>>, vector<1x256xf32>
    %2 = vector.broadcast %1 : vector<1x256xf32> to vector<128x256xf32>
    %3 = arith.mulf %0, %2 : vector<128x256xf32>
    %c0_3 = arith.constant 0 : index
    %c0_4 = arith.constant 0 : index
    %4 = vector.load %arg3[%c0_3, %c0_4] : memref<1x256xf32, #tpu.memory_space<vmem>>, vector<1x256xf32>
    %5 = vector.broadcast %4 : vector<1x256xf32> to vector<128x256xf32>
    %6 = arith.addf %3, %5 : vector<128x256xf32>
    %7 = vector.extract_strided_slice %6 {offsets = [0, 0], sizes = [128, 128], strides = [1, 1]} : vector<128x256xf32> to vector<128x128xf32>
    %cst = arith.constant 0.000000e+00 : f32
    %8 = vector.broadcast %cst : f32 to vector<128x128xf32>
    %9 = arith.maximumf %7, %8 : vector<128x128xf32>
    %c0_5 = arith.constant 0 : index
    %c0_6 = arith.constant 0 : index
    %10 = vector.load %arg4[%c0_5, %c0_6] : memref<128x128xf32, #tpu.memory_space<vmem>>, vector<128x128xf32>
    tpu.vector_store %arg4[%c0_5, %c0_6], %9 {strides = array<i32>} : memref<128x128xf32, #tpu.memory_space<vmem>>, vector<128x128xf32>,
    %11 = vector.extract_strided_slice %6 {offsets = [0, 128], sizes = [128, 128], strides = [1, 1]} : vector<128x256xf32> to vector<128x128xf32>
    %c0_7 = arith.constant 0 : index
    %c0_8 = arith.constant 0 : index
    %12 = vector.load %arg5[%c0_7, %c0_8] : memref<128x128xf32, #tpu.memory_space<vmem>>, vector<128x128xf32>
    tpu.vector_store %arg5[%c0_7, %c0_8], %11 {strides = array<i32>} : memref<128x128xf32, #tpu.memory_space<vmem>>, vector<128x128xf32>,
    return
  }
  func.func @transform_0(%arg0: i32) -> (i32, i32) {
    %c0_i32 = arith.constant 0 : i32
    %c0_i32_0 = arith.constant 0 : i32
    return %arg0, %c0_i32 : i32, i32
  }
  func.func @transform_1(%arg0: i32) -> (i32, i32) {
    %c0_i32 = arith.constant 0 : i32
    %c0_i32_0 = arith.constant 0 : i32
    %c0_i32_1 = arith.constant 0 : i32
    return %c0_i32, %c0_i32_0 : i32, i32
  }
  func.func @transform_2(%arg0: i32) -> (i32, i32) {
    %c0_i32 = arith.constant 0 : i32
    %c0_i32_0 = arith.constant 0 : i32
    %c0_i32_1 = arith.constant 0 : i32
    return %c0_i32, %c0_i32_0 : i32, i32
  }
  func.func @transform_3(%arg0: i32) -> (i32, i32) {
    %c0_i32 = arith.constant 0 : i32
    %c0_i32_0 = arith.constant 0 : i32
    return %arg0, %c0_i32 : i32, i32
  }
  func.func @transform_4(%arg0: i32) -> (i32, i32) {
    %c0_i32 = arith.constant 0 : i32
    %c0_i32_0 = arith.constant 0 : i32
    return %arg0, %c0_i32 : i32, i32
  }
}

module attributes {stable_mosaic.version = 11 : i64} {
  func.func @_mm_stats_kernel(%arg0: i32, %arg1: memref<128x128xbf16, #tpu.memory_space<vmem>>, %arg2: memref<128x128xbf16, #tpu.memory_space<vmem>>, %arg3: memref<128x128xf32, #tpu.memory_space<vmem>>, %arg4: memref<1x8x128xf32, #tpu.memory_space<vmem>>) attributes {dimension_semantics = [#tpu.dimension_semantics<parallel>], iteration_bounds = array<i64: 1>, scalar_prefetch = 0 : i64, scratch_operands = 0 : i64, tpu.core_type = #tpu.core_type<tc>, window_params = [{transform_indices = @transform_0, window_bounds = array<i64: 128, 128>}, {pipeline_mode = #tpu.pipeline_mode<synchronous>, transform_indices = @transform_1, window_bounds = array<i64: 128, 128>}, {transform_indices = @transform_2, window_bounds = array<i64: 128, 128>}, {transform_indices = @transform_3, window_bounds = array<i64: 1, 8, 128>}]} {
    %c0 = arith.constant 0 : index
    %c0_0 = arith.constant 0 : index
    %0 = vector.load %arg1[%c0, %c0_0] : memref<128x128xbf16, #tpu.memory_space<vmem>>, vector<128x128xbf16>
    %c0_1 = arith.constant 0 : index
    %c0_2 = arith.constant 0 : index
    %1 = vector.load %arg2[%c0_1, %c0_2] : memref<128x128xbf16, #tpu.memory_space<vmem>>, vector<128x128xbf16>
    %cst = arith.constant dense<0.000000e+00> : vector<128x128xf32>
    %2 = tpu.matmul %0, %1, %cst {dimension_numbers = #tpu.dot_dimension_numbers<[1], [0], [0], [1], [0, 0, 1, 1], [], []>} : vector<128x128xbf16>, vector<128x128xbf16>, vector<128x128xf32> -> vector<128x128xf32>
    %c0_3 = arith.constant 0 : index
    %c0_4 = arith.constant 0 : index
    %3 = vector.load %arg3[%c0_3, %c0_4] : memref<128x128xf32, #tpu.memory_space<vmem>>, vector<128x128xf32>
    tpu.vector_store %arg3[%c0_3, %c0_4], %2 {strides = array<i32>} : memref<128x128xf32, #tpu.memory_space<vmem>>, vector<128x128xf32>,
    %cst_5 = arith.constant dense<0.000000e+00> : vector<128xf32>
    %4 = vector.multi_reduction <add>, %2, %cst_5 [0] : vector<128x128xf32> to vector<128xf32>
    %5 = vector.shape_cast %4 : vector<128xf32> to vector<1x128xf32>
    %6 = arith.mulf %2, %2 : vector<128x128xf32>
    %cst_6 = arith.constant dense<0.000000e+00> : vector<128xf32>
    %7 = vector.multi_reduction <add>, %6, %cst_6 [0] : vector<128x128xf32> to vector<128xf32>
    %8 = vector.shape_cast %7 : vector<128xf32> to vector<1x128xf32>
    %9 = tpu.iota {dimensions = array<i32: 0>} : vector<8x128xi32>
    %c0_i32 = arith.constant 0 : i32
    %10 = vector.broadcast %c0_i32 : i32 to vector<8x128xi32>
    %11 = arith.cmpi eq, %9, %10 : vector<8x128xi32>
    %cst_7 = arith.constant 0.000000e+00 : f32
    %12 = vector.shape_cast %5 : vector<1x128xf32> to vector<1x128xf32>
    %13 = vector.broadcast %12 : vector<1x128xf32> to vector<8x128xf32>
    %14 = vector.broadcast %cst_7 : f32 to vector<8x128xf32>
    %15 = arith.select %11, %13, %14 : vector<8x128xi1>, vector<8x128xf32>
    %c1_i32 = arith.constant 1 : i32
    %16 = vector.broadcast %c1_i32 : i32 to vector<8x128xi32>
    %17 = arith.cmpi eq, %9, %16 : vector<8x128xi32>
    %cst_8 = arith.constant 0.000000e+00 : f32
    %18 = vector.shape_cast %8 : vector<1x128xf32> to vector<1x128xf32>
    %19 = vector.broadcast %18 : vector<1x128xf32> to vector<8x128xf32>
    %20 = vector.broadcast %cst_8 : f32 to vector<8x128xf32>
    %21 = arith.select %17, %19, %20 : vector<8x128xi1>, vector<8x128xf32>
    %22 = arith.addf %15, %21 : vector<8x128xf32>
    %23 = vector.shape_cast %22 : vector<8x128xf32> to vector<1x8x128xf32>
    %c0_9 = arith.constant 0 : index
    %c0_10 = arith.constant 0 : index
    %c0_11 = arith.constant 0 : index
    %24 = vector.load %arg4[%c0_9, %c0_10, %c0_11] : memref<1x8x128xf32, #tpu.memory_space<vmem>>, vector<1x8x128xf32>
    tpu.vector_store %arg4[%c0_9, %c0_10, %c0_11], %23 {strides = array<i32>} : memref<1x8x128xf32, #tpu.memory_space<vmem>>, vector<1x8x128xf32>,
    return
  }
  func.func @transform_0(%arg0: i32) -> (i32, i32) {
    %c0_i32 = arith.constant 0 : i32
    %c0_i32_0 = arith.constant 0 : i32
    return %arg0, %c0_i32 : i32, i32
  }
  func.func @transform_1(%arg0: i32) -> (i32, i32) {
    %c0_i32 = arith.constant 0 : i32
    %c0_i32_0 = arith.constant 0 : i32
    %c0_i32_1 = arith.constant 0 : i32
    return %c0_i32, %c0_i32_0 : i32, i32
  }
  func.func @transform_2(%arg0: i32) -> (i32, i32) {
    %c0_i32 = arith.constant 0 : i32
    %c0_i32_0 = arith.constant 0 : i32
    return %arg0, %c0_i32 : i32, i32
  }
  func.func @transform_3(%arg0: i32) -> (i32, i32, i32) {
    %c0_i32 = arith.constant 0 : i32
    %c0_i32_0 = arith.constant 0 : i32
    %c0_i32_1 = arith.constant 0 : i32
    return %arg0, %c0_i32, %c0_i32_0 : i32, i32, i32
  }
}

module attributes {stable_mosaic.version = 11 : i64} {
  func.func @_bn_add_relu_kernel(%arg0: i32, %arg1: memref<128x128xf32, #tpu.memory_space<vmem>>, %arg2: memref<1x128xf32, #tpu.memory_space<vmem>>, %arg3: memref<1x128xf32, #tpu.memory_space<vmem>>, %arg4: memref<128x128xf32, #tpu.memory_space<vmem>>, %arg5: memref<128x128xf32, #tpu.memory_space<vmem>>) attributes {dimension_semantics = [#tpu.dimension_semantics<parallel>], iteration_bounds = array<i64: 1>, scalar_prefetch = 0 : i64, scratch_operands = 0 : i64, tpu.core_type = #tpu.core_type<tc>, window_params = [{transform_indices = @transform_0, window_bounds = array<i64: 128, 128>}, {pipeline_mode = #tpu.pipeline_mode<synchronous>, transform_indices = @transform_1, window_bounds = array<i64: 1, 128>}, {pipeline_mode = #tpu.pipeline_mode<synchronous>, transform_indices = @transform_2, window_bounds = array<i64: 1, 128>}, {transform_indices = @transform_3, window_bounds = array<i64: 128, 128>}, {transform_indices = @transform_4, window_bounds = array<i64: 128, 128>}]} {
    %c0 = arith.constant 0 : index
    %c0_0 = arith.constant 0 : index
    %0 = vector.load %arg1[%c0, %c0_0] : memref<128x128xf32, #tpu.memory_space<vmem>>, vector<128x128xf32>
    %c0_1 = arith.constant 0 : index
    %c0_2 = arith.constant 0 : index
    %1 = vector.load %arg2[%c0_1, %c0_2] : memref<1x128xf32, #tpu.memory_space<vmem>>, vector<1x128xf32>
    %2 = vector.broadcast %1 : vector<1x128xf32> to vector<128x128xf32>
    %3 = arith.mulf %0, %2 : vector<128x128xf32>
    %c0_3 = arith.constant 0 : index
    %c0_4 = arith.constant 0 : index
    %4 = vector.load %arg3[%c0_3, %c0_4] : memref<1x128xf32, #tpu.memory_space<vmem>>, vector<1x128xf32>
    %5 = vector.broadcast %4 : vector<1x128xf32> to vector<128x128xf32>
    %6 = arith.addf %3, %5 : vector<128x128xf32>
    %c0_5 = arith.constant 0 : index
    %c0_6 = arith.constant 0 : index
    %7 = vector.load %arg4[%c0_5, %c0_6] : memref<128x128xf32, #tpu.memory_space<vmem>>, vector<128x128xf32>
    %8 = arith.addf %6, %7 : vector<128x128xf32>
    %cst = arith.constant 0.000000e+00 : f32
    %9 = vector.broadcast %cst : f32 to vector<128x128xf32>
    %10 = arith.maximumf %8, %9 : vector<128x128xf32>
    %c0_7 = arith.constant 0 : index
    %c0_8 = arith.constant 0 : index
    %11 = vector.load %arg5[%c0_7, %c0_8] : memref<128x128xf32, #tpu.memory_space<vmem>>, vector<128x128xf32>
    tpu.vector_store %arg5[%c0_7, %c0_8], %10 {strides = array<i32>} : memref<128x128xf32, #tpu.memory_space<vmem>>, vector<128x128xf32>,
    return
  }
  func.func @transform_0(%arg0: i32) -> (i32, i32) {
    %c0_i32 = arith.constant 0 : i32
    %c0_i32_0 = arith.constant 0 : i32
    return %arg0, %c0_i32 : i32, i32
  }
  func.func @transform_1(%arg0: i32) -> (i32, i32) {
    %c0_i32 = arith.constant 0 : i32
    %c0_i32_0 = arith.constant 0 : i32
    %c0_i32_1 = arith.constant 0 : i32
    return %c0_i32, %c0_i32_0 : i32, i32
  }
  func.func @transform_2(%arg0: i32) -> (i32, i32) {
    %c0_i32 = arith.constant 0 : i32
    %c0_i32_0 = arith.constant 0 : i32
    %c0_i32_1 = arith.constant 0 : i32
    return %c0_i32, %c0_i32_0 : i32, i32
  }
  func.func @transform_3(%arg0: i32) -> (i32, i32) {
    %c0_i32 = arith.constant 0 : i32
    %c0_i32_0 = arith.constant 0 : i32
    return %arg0, %c0_i32 : i32, i32
  }
  func.func @transform_4(%arg0: i32) -> (i32, i32) {
    %c0_i32 = arith.constant 0 : i32
    %c0_i32_0 = arith.constant 0 : i32
    return %arg0, %c0_i32 : i32, i32
  }
}

</mosaic_0001>

<llo_original>
// kernel: _lambda_.5
$region0: #{_lambda_.5}
  #allocation0 [shape = 'u32[]', space=smem, size = 0x4, offset = 0x4, fixed_abs, tag = 'smem constant byte address 0x4 - core index']
  #allocation1 [shape = 'u32[144,128]{1,0:T(1,128)}', space=vmem, size = 0x12000, scoped, tag = 'internal scratch']
  %s0 = inlined_call_operand.vmem [shape: f32[128,256], index: 0, kind: input, shape index: {}]
  %s1 = inlined_call_operand.vmem [shape: f32[1,256], index: 1, kind: input, shape index: {}]
  %s2 = inlined_call_operand.vmem [shape: f32[1,256], index: 2, kind: input, shape index: {}]
  %s3 = inlined_call_operand.vmem [shape: f32[128,128], index: 3, kind: output, shape index: {0}]
  %s4 = inlined_call_operand.vmem [shape: f32[128,128], index: 4, kind: output, shape index: {1}]
  %5 = xla_tuple %s3, %s4
  %s6 = sld [smem:[#allocation0]]
  $region30: #{_lambda_.5} parent=0
    _
  %s8 = ssub.s32 1, %s6
  %s9 = scalar_select 0, %s8, %s6
  // Predicated region
  $region2: #{_lambda_.5} parent=0 // pred_check
    _
  $region3: #{_lambda_.5} parent=0 // pred_check_branch
    %11 = sbr.rel (0) target = $region5
  $region4: #{_lambda_.5} parent=0 // pred_region
    _
  $region5: #{_lambda_.5} parent=0 // pred_fallthru
    _
  // Predicated region
  $region6: #{_lambda_.5} parent=0 // pred_check
    _
  $region7: #{_lambda_.5} parent=0 // pred_check_branch
    %13 = sbr.rel (0) target = $region9
  $region8: #{_lambda_.5} parent=0 // pred_region
    _
  $region9: #{_lambda_.5} parent=0 // pred_fallthru
    _
  // Predicated region
  $region10: #{_lambda_.5} parent=0 // pred_check
    _
  $region11: #{_lambda_.5} parent=0 // pred_check_branch
    %15 = sbr.rel (0) target = $region13
  $region12: #{_lambda_.5} parent=0 // pred_region
    _
  $region13: #{_lambda_.5} parent=0 // pred_fallthru
    _
  %v16 = vld [vmem:[%s0] sm:$0xff]
  %v17 = vld [vmem:[%s0 + $0x8] sm:$0xff]
  %v18 = vld [vmem:[%s0 + $0x10] sm:$0xff]
  %v19 = vld [vmem:[%s0 + $0x18] sm:$0xff]
  %v20 = vld [vmem:[%s0 + $0x20] sm:$0xff]
  %v21 = vld [vmem:[%s0 + $0x28] sm:$0xff]
  %v22 = vld [vmem:[%s0 + $0x30] sm:$0xff]
  %v23 = vld [vmem:[%s0 + $0x38] sm:$0xff]
  %v24 = vld [vmem:[%s0 + $0x40] sm:$0xff]
  %v25 = vld [vmem:[%s0 + $0x48] sm:$0xff]
  %v26 = vld [vmem:[%s0 + $0x50] sm:$0xff]
  %v27 = vld [vmem:[%s0 + $0x58] sm:$0xff]
  %v28 = vld [vmem:[%s0 + $0x60] sm:$0xff]
  %v29 = vld [vmem:[%s0 + $0x68] sm:$0xff]
  %v30 = vld [vmem:[%s0 + $0x70] sm:$0xff]
  %v31 = vld [vmem:[%s0 + $0x78] sm:$0xff]
  %v32 = vld [vmem:[%s0 + $0x80] sm:$0xff]
  %v33 = vld [vmem:[%s0 + $0x88] sm:$0xff]
  %v34 = vld [vmem:[%s0 + $0x90] sm:$0xff]
  %v35 = vld [vmem:[%s0 + $0x98] sm:$0xff]
  %v36 = vld [vmem:[%s0 + $0xa0] sm:$0xff]
  %v37 = vld [vmem:[%s0 + $0xa8] sm:$0xff]
  %v38 = vld [vmem:[%s0 + $0xb0] sm:$0xff]
  %v39 = vld [vmem:[%s0 + $0xb8] sm:$0xff]
  %v40 = vld [vmem:[%s0 + $0xc0] sm:$0xff]
  %v41 = vld [vmem:[%s0 + $0xc8] sm:$0xff]
  %v42 = vld [vmem:[%s0 + $0xd0] sm:$0xff]
  %v43 = vld [vmem:[%s0 + $0xd8] sm:$0xff]
  %v44 = vld [vmem:[%s0 + $0xe0] sm:$0xff]
  %v45 = vld [vmem:[%s0 + $0xe8] sm:$0xff]
  %v46 = vld [vmem:[%s0 + $0xf0] sm:$0xff]
  %v47 = vld [vmem:[%s0 + $0xf8] sm:$0xff]
  %v48 = vld [vmem:[%s1] sm:$0x3]
  %v50 = vlaneseq
  %v51 = vshrl.u32 %v50, 7
  %v52 = vsub.s32 0, %v51
  %v53 = vrot.slane %v48, %v52
  %v54 = vlaneseq
  %v55 = vshrl.u32 %v54, 7
  %v56 = vsub.s32 1, %v55
  %v57 = vrot.slane %v48, %v56
  %v60 = vmul.f32 %v16, %v53
  %v61 = vmul.f32 %v17, %v57
  %v62 = vmul.f32 %v18, %v53
  %v63 = vmul.f32 %v19, %v57
  %v64 = vmul.f32 %v20, %v53
  %v65 = vmul.f32 %v21, %v57
  %v66 = vmul.f32 %v22, %v53
  %v67 = vmul.f32 %v23, %v57
  %v68 = vmul.f32 %v24, %v53
  %v69 = vmul.f32 %v25, %v57
  %v70 = vmul.f32 %v26, %v53
  %v71 = vmul.f32 %v27, %v57
  %v72 = vmul.f32 %v28, %v53
  %v73 = vmul.f32 %v29, %v57
  %v74 = vmul.f32 %v30, %v53
  %v75 = vmul.f32 %v31, %v57
  %v76 = vmul.f32 %v32, %v53
  %v77 = vmul.f32 %v33, %v57
  %v78 = vmul.f32 %v34, %v53
  %v79 = vmul.f32 %v35, %v57
  %v80 = vmul.f32 %v36, %v53
  %v81 = vmul.f32 %v37, %v57
  %v82 = vmul.f32 %v38, %v53
  %v83 = vmul.f32 %v39, %v57
  %v84 = vmul.f32 %v40, %v53
  %v85 = vmul.f32 %v41, %v57
  %v86 = vmul.f32 %v42, %v53
  %v87 = vmul.f32 %v43, %v57
  %v88 = vmul.f32 %v44, %v53
  %v89 = vmul.f32 %v45, %v57
  %v90 = vmul.f32 %v46, %v53
  %v91 = vmul.f32 %v47, %v57
  %v92 = vld [vmem:[%s2] sm:$0x3]
  %v94 = vlaneseq
  %v95 = vshrl.u32 %v94, 7
  %v96 = vsub.s32 0, %v95
  %v97 = vrot.slane %v92, %v96
  %v98 = vlaneseq
  %v99 = vshrl.u32 %v98, 7
  %v100 = vsub.s32 1, %v99
  %v101 = vrot.slane %v92, %v100
  %v104 = vadd.f32 %v60, %v97
  %v105 = vadd.f32 %v61, %v101
  %v106 = vadd.f32 %v62, %v97
  %v107 = vadd.f32 %v63, %v101
  %v108 = vadd.f32 %v64, %v97
  %v109 = vadd.f32 %v65, %v101
  %v110 = vadd.f32 %v66, %v97
  %v111 = vadd.f32 %v67, %v101
  %v112 = vadd.f32 %v68, %v97
  %v113 = vadd.f32 %v69, %v101
  %v114 = vadd.f32 %v70, %v97
  %v115 = vadd.f32 %v71, %v101
  %v116 = vadd.f32 %v72, %v97
  %v117 = vadd.f32 %v73, %v101
  %v118 = vadd.f32 %v74, %v97
  %v119 = vadd.f32 %v75, %v101
  %v120 = vadd.f32 %v76, %v97
  %v121 = vadd.f32 %v77, %v101
  %v122 = vadd.f32 %v78, %v97
  %v123 = vadd.f32 %v79, %v101
  %v124 = vadd.f32 %v80, %v97
  %v125 = vadd.f32 %v81, %v101
  %v126 = vadd.f32 %v82, %v97
  %v127 = vadd.f32 %v83, %v101
  %v128 = vadd.f32 %v84, %v97
  %v129 = vadd.f32 %v85, %v101
  %v130 = vadd.f32 %v86, %v97
  %v131 = vadd.f32 %v87, %v101
  %v132 = vadd.f32 %v88, %v97
  %v133 = vadd.f32 %v89, %v101
  %v134 = vadd.f32 %v90, %v97
  %v135 = vadd.f32 %v91, %v101
  %v136 = vmax.f32 %v104, 0.0
  %v137 = vmax.f32 %v106, 0.0
  %v138 = vmax.f32 %v108, 0.0
  %v139 = vmax.f32 %v110, 0.0
  %v140 = vmax.f32 %v112, 0.0
  %v141 = vmax.f32 %v114, 0.0
  %v142 = vmax.f32 %v116, 0.0
  %v143 = vmax.f32 %v118, 0.0
  %v144 = vmax.f32 %v120, 0.0
  %v145 = vmax.f32 %v122, 0.0
  %v146 = vmax.f32 %v124, 0.0
  %v147 = vmax.f32 %v126, 0.0
  %v148 = vmax.f32 %v128, 0.0
  %v149 = vmax.f32 %v130, 0.0
  %v150 = vmax.f32 %v132, 0.0
  %v151 = vmax.f32 %v134, 0.0
  %152 = vst [vmem:[%s3] sm:$0xff] %v136
  %153 = vst [vmem:[%s3 + $0x8] sm:$0xff] %v137
  %154 = vst [vmem:[%s3 + $0x10] sm:$0xff] %v138
  %155 = vst [vmem:[%s3 + $0x18] sm:$0xff] %v139
  %156 = vst [vmem:[%s3 + $0x20] sm:$0xff] %v140
  %157 = vst [vmem:[%s3 + $0x28] sm:$0xff] %v141
  %158 = vst [vmem:[%s3 + $0x30] sm:$0xff] %v142
  %159 = vst [vmem:[%s3 + $0x38] sm:$0xff] %v143
  %160 = vst [vmem:[%s3 + $0x40] sm:$0xff] %v144
  %161 = vst [vmem:[%s3 + $0x48] sm:$0xff] %v145
  %162 = vst [vmem:[%s3 + $0x50] sm:$0xff] %v146
  %163 = vst [vmem:[%s3 + $0x58] sm:$0xff] %v147
  %164 = vst [vmem:[%s3 + $0x60] sm:$0xff] %v148
  %165 = vst [vmem:[%s3 + $0x68] sm:$0xff] %v149
  %166 = vst [vmem:[%s3 + $0x70] sm:$0xff] %v150
  %167 = vst [vmem:[%s3 + $0x78] sm:$0xff] %v151
  %168 = vst [vmem:[%s4] sm:$0xff] %v105
  %169 = vst [vmem:[%s4 + $0x8] sm:$0xff] %v107
  %170 = vst [vmem:[%s4 + $0x10] sm:$0xff] %v109
  %171 = vst [vmem:[%s4 + $0x18] sm:$0xff] %v111
  %172 = vst [vmem:[%s4 + $0x20] sm:$0xff] %v113
  %173 = vst [vmem:[%s4 + $0x28] sm:$0xff] %v115
  %174 = vst [vmem:[%s4 + $0x30] sm:$0xff] %v117
  %175 = vst [vmem:[%s4 + $0x38] sm:$0xff] %v119
  %176 = vst [vmem:[%s4 + $0x40] sm:$0xff] %v121
  %177 = vst [vmem:[%s4 + $0x48] sm:$0xff] %v123
  %178 = vst [vmem:[%s4 + $0x50] sm:$0xff] %v125
  %179 = vst [vmem:[%s4 + $0x58] sm:$0xff] %v127
  %180 = vst [vmem:[%s4 + $0x60] sm:$0xff] %v129
  %181 = vst [vmem:[%s4 + $0x68] sm:$0xff] %v131
  %182 = vst [vmem:[%s4 + $0x70] sm:$0xff] %v133
  %183 = vst [vmem:[%s4 + $0x78] sm:$0xff] %v135
  // Predicated region
  $region14: #{_lambda_.5} parent=0 // pred_check
    _
  $region15: #{_lambda_.5} parent=0 // pred_check_branch
    %185 = sbr.rel (0) target = $region17
  $region16: #{_lambda_.5} parent=0 // pred_region
    _
  $region17: #{_lambda_.5} parent=0 // pred_fallthru
    _
  // Predicated region
  $region18: #{_lambda_.5} parent=0 // pred_check
    _
  $region19: #{_lambda_.5} parent=0 // pred_check_branch
    %187 = sbr.rel (0) target = $region21
  $region20: #{_lambda_.5} parent=0 // pred_region
    _
  $region21: #{_lambda_.5} parent=0 // pred_fallthru
    _
  // Predicated region
  $region22: #{_lambda_.5} parent=0 // pred_check
    _
  $region23: #{_lambda_.5} parent=0 // pred_check_branch
    %189 = sbr.rel (0) target = $region25
  $region24: #{_lambda_.5} parent=0 // pred_region
    _
  $region25: #{_lambda_.5} parent=0 // pred_fallthru
    _
  // Predicated region
  $region26: #{_lambda_.5} parent=0 // pred_check
    _
  $region27: #{_lambda_.5} parent=0 // pred_check_branch
    %191 = sbr.rel (0) target = $region29
  $region28: #{_lambda_.5} parent=0 // pred_region
    _
  $region29: #{_lambda_.5} parent=0 // pred_fallthru
    _

// kernel: _lambda_.4
$region0: #{_lambda_.4}
  #allocation0 [shape = 'u32[]', space=smem, size = 0x4, offset = 0x4, fixed_abs, tag = 'smem constant byte address 0x4 - core index']
  #allocation1 [shape = 'u32[144,128]{1,0:T(1,128)}', space=vmem, size = 0x12000, scoped, tag = 'internal scratch']
  %s0 = inlined_call_operand.vmem [shape: bf16[128,128], index: 0, kind: input, shape index: {}]
  %s1 = inlined_call_operand.vmem [shape: bf16[128,256], index: 1, kind: input, shape index: {}]
  %s2 = inlined_call_operand.vmem [shape: f32[128,256], index: 2, kind: output, shape index: {0}]
  %s3 = inlined_call_operand.vmem [shape: f32[1,8,256], index: 3, kind: output, shape index: {1}]
  %4 = xla_tuple %s2, %s3
  %s5 = sld [smem:[#allocation0]]
  $region26: #{_lambda_.4} parent=0
    _
  %s7 = ssub.s32 1, %s5
  %s8 = scalar_select 0, %s7, %s5
  // Predicated region
  $region2: #{_lambda_.4} parent=0 // pred_check
    _
  $region3: #{_lambda_.4} parent=0 // pred_check_branch
    %10 = sbr.rel (0) target = $region5
  $region4: #{_lambda_.4} parent=0 // pred_region
    _
  $region5: #{_lambda_.4} parent=0 // pred_fallthru
    _
  // Predicated region
  $region6: #{_lambda_.4} parent=0 // pred_check
    _
  $region7: #{_lambda_.4} parent=0 // pred_check_branch
    %12 = sbr.rel (0) target = $region9
  $region8: #{_lambda_.4} parent=0 // pred_region
    _
  $region9: #{_lambda_.4} parent=0 // pred_fallthru
    _
  %v14 = vld [vmem:[%s0] sm:$0xf]
  %v15 = vld [vmem:[%s0 + $0x4] sm:$0xf]
  %v16 = vld [vmem:[%s0 + $0x8] sm:$0xf]
  %v17 = vld [vmem:[%s0 + $0xc] sm:$0xf]
  %v18 = vld [vmem:[%s0 + $0x10] sm:$0xf]
  %v19 = vld [vmem:[%s0 + $0x14] sm:$0xf]
  %v20 = vld [vmem:[%s0 + $0x18] sm:$0xf]
  %v21 = vld [vmem:[%s0 + $0x1c] sm:$0xf]
  %v22 = vld [vmem:[%s0 + $0x20] sm:$0xf]
  %v23 = vld [vmem:[%s0 + $0x24] sm:$0xf]
  %v24 = vld [vmem:[%s0 + $0x28] sm:$0xf]
  %v25 = vld [vmem:[%s0 + $0x2c] sm:$0xf]
  %v26 = vld [vmem:[%s0 + $0x30] sm:$0xf]
  %v27 = vld [vmem:[%s0 + $0x34] sm:$0xf]
  %v28 = vld [vmem:[%s0 + $0x38] sm:$0xf]
  %v29 = vld [vmem:[%s0 + $0x3c] sm:$0xf]
  %v30 = vld [vmem:[%s1] sm:$0xff]
  %v31 = vld [vmem:[%s1 + $0x8] sm:$0xff]
  %v32 = vld [vmem:[%s1 + $0x10] sm:$0xff]
  %v33 = vld [vmem:[%s1 + $0x18] sm:$0xff]
  %v34 = vld [vmem:[%s1 + $0x20] sm:$0xff]
  %v35 = vld [vmem:[%s1 + $0x28] sm:$0xff]
  %v36 = vld [vmem:[%s1 + $0x30] sm:$0xff]
  %v37 = vld [vmem:[%s1 + $0x38] sm:$0xff]
  %v38 = vld [vmem:[%s1 + $0x40] sm:$0xff]
  %v39 = vld [vmem:[%s1 + $0x48] sm:$0xff]
  %v40 = vld [vmem:[%s1 + $0x50] sm:$0xff]
  %v41 = vld [vmem:[%s1 + $0x58] sm:$0xff]
  %v42 = vld [vmem:[%s1 + $0x60] sm:$0xff]
  %v43 = vld [vmem:[%s1 + $0x68] sm:$0xff]
  %v44 = vld [vmem:[%s1 + $0x70] sm:$0xff]
  %v45 = vld [vmem:[%s1 + $0x78] sm:$0xff]
  %v62 = vunpack.c.l.b16 %v14
  %v63 = vunpack.c.l.b16 %v15
  %v64 = vunpack.c.l.b16 %v16
  %v65 = vunpack.c.l.b16 %v17
  %v66 = vunpack.c.l.b16 %v18
  %v67 = vunpack.c.l.b16 %v19
  %v68 = vunpack.c.l.b16 %v20
  %v69 = vunpack.c.l.b16 %v21
  %v70 = vunpack.c.l.b16 %v22
  %v71 = vunpack.c.l.b16 %v23
  %v72 = vunpack.c.l.b16 %v24
  %v73 = vunpack.c.l.b16 %v25
  %v74 = vunpack.c.l.b16 %v26
  %v75 = vunpack.c.l.b16 %v27
  %v76 = vunpack.c.l.b16 %v28
  %v77 = vunpack.c.l.b16 %v29
  %v78 = vpack.c.b16 %v63, %v62
  %v79 = vpack.c.b16 %v65, %v64
  %v80 = vpack.c.b16 %v67, %v66
  %v81 = vpack.c.b16 %v69, %v68
  %v82 = vpack.c.b16 %v71, %v70
  %v83 = vpack.c.b16 %v73, %v72
  %v84 = vpack.c.b16 %v75, %v74
  %v85 = vpack.c.b16 %v77, %v76
  %v110 = vunpack.c.l.b16 %v30
  %v111 = vunpack.c.h.b16 %v30
  %v112 = vunpack.c.l.b16 %v31
  %v113 = vunpack.c.h.b16 %v31
  %v114 = vunpack.c.l.b16 %v32
  %v115 = vunpack.c.h.b16 %v32
  %v116 = vunpack.c.l.b16 %v33
  %v117 = vunpack.c.h.b16 %v33
  %v118 = vunpack.c.l.b16 %v34
  %v119 = vunpack.c.h.b16 %v34
  %v120 = vunpack.c.l.b16 %v35
  %v121 = vunpack.c.h.b16 %v35
  %v122 = vunpack.c.l.b16 %v36
  %v123 = vunpack.c.h.b16 %v36
  %v124 = vunpack.c.l.b16 %v37
  %v125 = vunpack.c.h.b16 %v37
  %v126 = vunpack.c.l.b16 %v38
  %v127 = vunpack.c.h.b16 %v38
  %v128 = vunpack.c.l.b16 %v39
  %v129 = vunpack.c.h.b16 %v39
  %v130 = vunpack.c.l.b16 %v40
  %v131 = vunpack.c.h.b16 %v40
  %v132 = vunpack.c.l.b16 %v41
  %v133 = vunpack.c.h.b16 %v41
  %v134 = vunpack.c.l.b16 %v42
  %v135 = vunpack.c.h.b16 %v42
  %v136 = vunpack.c.l.b16 %v43
  %v137 = vunpack.c.h.b16 %v43
  %v138 = vunpack.c.l.b16 %v44
  %v139 = vunpack.c.h.b16 %v44
  %v140 = vunpack.c.l.b16 %v45
  %v141 = vunpack.c.h.b16 %v45
  %v142 = vpack.c.b16 %v112, %v110
  %v143 = vpack.c.b16 %v113, %v111
  %v144 = vpack.c.b16 %v116, %v114
  %v145 = vpack.c.b16 %v117, %v115
  %v146 = vpack.c.b16 %v120, %v118
  %v147 = vpack.c.b16 %v121, %v119
  %v148 = vpack.c.b16 %v124, %v122
  %v149 = vpack.c.b16 %v125, %v123
  %v150 = vpack.c.b16 %v128, %v126
  %v151 = vpack.c.b16 %v129, %v127
  %v152 = vpack.c.b16 %v132, %v130
  %v153 = vpack.c.b16 %v133, %v131
  %v154 = vpack.c.b16 %v136, %v134
  %v155 = vpack.c.b16 %v137, %v135
  %v156 = vpack.c.b16 %v140, %v138
  %v157 = vpack.c.b16 %v141, %v139
  %174 = vmatprep.subr.bf16.mxu0 %v157
  %175 = vmatpush1.bf16.msra.mxu0 %v156
  %176 = vmatprep.subr.bf16.mxu0 %v155
  %177 = vmatpush1.bf16.msra.mxu0 %v154
  %178 = vmatprep.subr.bf16.mxu0 %v153
  %179 = vmatpush1.bf16.msra.mxu0 %v152
  %180 = vmatprep.subr.bf16.mxu0 %v151
  %181 = vmatpush1.bf16.msra.mxu0 %v150
  %182 = vmatprep.subr.bf16.mxu0 %v149
  %183 = vmatpush1.bf16.msra.mxu0 %v148
  %184 = vmatprep.subr.bf16.mxu0 %v147
  %185 = vmatpush1.bf16.msra.mxu0 %v146
  %186 = vmatprep.subr.bf16.mxu0 %v145
  %187 = vmatpush1.bf16.msra.mxu0 %v144
  %188 = vmatprep.subr.bf16.mxu0 %v143
  %189 = vmatpush1.bf16.msra.mxu0 %v142
  %190 = vmatprep.subr.bf16.mxu0 0
  %191 = vmatpush2.bf16.msra.mxu0 0
  %192 = vmatprep.subr.bf16.mxu0 0
  %193 = vmatpush2.bf16.msra.mxu0 0
  %194 = vmatprep.subr.bf16.mxu0 0
  %195 = vmatpush2.bf16.msra.mxu0 0
  %196 = vmatprep.subr.bf16.mxu0 0
  %197 = vmatpush2.bf16.msra.mxu0 0
  %198 = vmatprep.subr.bf16.mxu0 0
  %199 = vmatpush2.bf16.msra.mxu0 0
  %200 = vmatprep.subr.bf16.mxu0 0
  %201 = vmatpush2.bf16.msra.mxu0 0
  %202 = vmatprep.subr.bf16.mxu0 0
  %203 = vmatpush2.bf16.msra.mxu0 0
  %204 = vmatprep.subr.bf16.mxu0 0
  %205 = vmatpush2.bf16.msra.mxu0 0
  %206 = vmatprep.mubr.bf16.mxu0 0
  %207 = vmatmul.mubr.bf16.gmra.mxu0 %v78
  %v208 = vpop.f32.mrf.mxu0
  %v209 = vadd.f32 0.0, %v208
  %v210 = vpop.f32.mrf.mxu0
  %v211 = vadd.f32 0.0, %v210
  %v212 = vpop.f32.mrf.mxu0
  %v213 = vadd.f32 0.0, %v212
  %v214 = vpop.f32.mrf.mxu0
  %v215 = vadd.f32 0.0, %v214
  %216 = vmatprep.mubr.bf16.mxu0 0
  %217 = vmatmul.mubr.bf16.gmra.mxu0 %v79
  %v218 = vpop.f32.mrf.mxu0
  %v219 = vadd.f32 0.0, %v218
  %v220 = vpop.f32.mrf.mxu0
  %v221 = vadd.f32 0.0, %v220
  %v222 = vpop.f32.mrf.mxu0
  %v223 = vadd.f32 0.0, %v222
  %v224 = vpop.f32.mrf.mxu0
  %v225 = vadd.f32 0.0, %v224
  %226 = vmatprep.mubr.bf16.mxu0 0
  %227 = vmatmul.mubr.bf16.gmra.mxu0 %v80
  %v228 = vpop.f32.mrf.mxu0
  %v229 = vadd.f32 0.0, %v228
  %v230 = vpop.f32.mrf.mxu0
  %v231 = vadd.f32 0.0, %v230
  %v232 = vpop.f32.mrf.mxu0
  %v233 = vadd.f32 0.0, %v232
  %v234 = vpop.f32.mrf.mxu0
  %v235 = vadd.f32 0.0, %v234
  %236 = vmatprep.mubr.bf16.mxu0 0
  %237 = vmatmul.mubr.bf16.gmra.mxu0 %v81
  %v238 = vpop.f32.mrf.mxu0
  %v239 = vadd.f32 0.0, %v238
  %v240 = vpop.f32.mrf.mxu0
  %v241 = vadd.f32 0.0, %v240
  %v242 = vpop.f32.mrf.mxu0
  %v243 = vadd.f32 0.0, %v242
  %v244 = vpop.f32.mrf.mxu0
  %v245 = vadd.f32 0.0, %v244
  %246 = vmatprep.mubr.bf16.mxu0 0
  %247 = vmatmul.mubr.bf16.gmra.mxu0 %v82
  %v248 = vpop.f32.mrf.mxu0
  %v249 = vadd.f32 0.0, %v248
  %v250 = vpop.f32.mrf.mxu0
  %v251 = vadd.f32 0.0, %v250
  %v252 = vpop.f32.mrf.mxu0
  %v253 = vadd.f32 0.0, %v252
  %v254 = vpop.f32.mrf.mxu0
  %v255 = vadd.f32 0.0, %v254
  %256 = vmatprep.mubr.bf16.mxu0 0
  %257 = vmatmul.mubr.bf16.gmra.mxu0 %v83
  %v258 = vpop.f32.mrf.mxu0
  %v259 = vadd.f32 0.0, %v258
  %v260 = vpop.f32.mrf.mxu0
  %v261 = vadd.f32 0.0, %v260
  %v262 = vpop.f32.mrf.mxu0
  %v263 = vadd.f32 0.0, %v262
  %v264 = vpop.f32.mrf.mxu0
  %v265 = vadd.f32 0.0, %v264
  %266 = vmatprep.mubr.bf16.mxu0 0
  %267 = vmatmul.mubr.bf16.gmra.mxu0 %v84
  %v268 = vpop.f32.mrf.mxu0
  %v269 = vadd.f32 0.0, %v268
  %v270 = vpop.f32.mrf.mxu0
  %v271 = vadd.f32 0.0, %v270
  %v272 = vpop.f32.mrf.mxu0
  %v273 = vadd.f32 0.0, %v272
  %v274 = vpop.f32.mrf.mxu0
  %v275 = vadd.f32 0.0, %v274
  %276 = vmatprep.mubr.bf16.mxu0 0
  %277 = vmatmul.mubr.bf16.gmra.mxu0 %v85
  %v278 = vpop.f32.mrf.mxu0
  %v279 = vadd.f32 0.0, %v278
  %v280 = vpop.f32.mrf.mxu0
  %v281 = vadd.f32 0.0, %v280
  %v282 = vpop.f32.mrf.mxu0
  %v283 = vadd.f32 0.0, %v282
  %v284 = vpop.f32.mrf.mxu0
  %v285 = vadd.f32 0.0, %v284
  %286 = vdwg.mxu0
  %287 = vst [vmem:[%s2] sm:$0xff] %v209
  %288 = vst [vmem:[%s2 + $0x8] sm:$0xff] %v211
  %289 = vst [vmem:[%s2 + $0x10] sm:$0xff] %v213
  %290 = vst [vmem:[%s2 + $0x18] sm:$0xff] %v215
  %291 = vst [vmem:[%s2 + $0x20] sm:$0xff] %v219
  %292 = vst [vmem:[%s2 + $0x28] sm:$0xff] %v221
  %293 = vst [vmem:[%s2 + $0x30] sm:$0xff] %v223
  %294 = vst [vmem:[%s2 + $0x38] sm:$0xff] %v225
  %295 = vst [vmem:[%s2 + $0x40] sm:$0xff] %v229
  %296 = vst [vmem:[%s2 + $0x48] sm:$0xff] %v231
  %297 = vst [vmem:[%s2 + $0x50] sm:$0xff] %v233
  %298 = vst [vmem:[%s2 + $0x58] sm:$0xff] %v235
  %299 = vst [vmem:[%s2 + $0x60] sm:$0xff] %v239
  %300 = vst [vmem:[%s2 + $0x68] sm:$0xff] %v241
  %301 = vst [vmem:[%s2 + $0x70] sm:$0xff] %v243
  %302 = vst [vmem:[%s2 + $0x78] sm:$0xff] %v245
  %303 = vst [vmem:[%s2 + $0x80] sm:$0xff] %v249
  %304 = vst [vmem:[%s2 + $0x88] sm:$0xff] %v251
  %305 = vst [vmem:[%s2 + $0x90] sm:$0xff] %v253
  %306 = vst [vmem:[%s2 + $0x98] sm:$0xff] %v255
  %307 = vst [vmem:[%s2 + $0xa0] sm:$0xff] %v259
  %308 = vst [vmem:[%s2 + $0xa8] sm:$0xff] %v261
  %309 = vst [vmem:[%s2 + $0xb0] sm:$0xff] %v263
  %310 = vst [vmem:[%s2 + $0xb8] sm:$0xff] %v265
  %311 = vst [vmem:[%s2 + $0xc0] sm:$0xff] %v269
  %312 = vst [vmem:[%s2 + $0xc8] sm:$0xff] %v271
  %313 = vst [vmem:[%s2 + $0xd0] sm:$0xff] %v273
  %314 = vst [vmem:[%s2 + $0xd8] sm:$0xff] %v275
  %315 = vst [vmem:[%s2 + $0xe0] sm:$0xff] %v279
  %316 = vst [vmem:[%s2 + $0xe8] sm:$0xff] %v281
  %317 = vst [vmem:[%s2 + $0xf0] sm:$0xff] %v283
  %318 = vst [vmem:[%s2 + $0xf8] sm:$0xff] %v285
  %v319 = vadd.f32 %v209, %v213
  %v320 = vadd.f32 %v319, %v219
  %v321 = vadd.f32 %v320, %v223
  %v322 = vadd.f32 %v321, %v229
  %v323 = vadd.f32 %v322, %v233
  %v324 = vadd.f32 %v323, %v239
  %v325 = vadd.f32 %v324, %v243
  %v326 = vadd.f32 %v325, %v249
  %v327 = vadd.f32 %v326, %v253
  %v328 = vadd.f32 %v327, %v259
  %v329 = vadd.f32 %v328, %v263
  %v330 = vadd.f32 %v329, %v269
  %v331 = vadd.f32 %v330, %v273
  %v332 = vadd.f32 %v331, %v279
  %v333 = vadd.f32 %v332, %v283
  %v334 = vrot.slane %v333, 4
  %v335 = vadd.f32 %v333, %v334
  %v336 = vrot.slane %v335, 2
  %v337 = vadd.f32 %v335, %v336
  %v338 = vrot.slane %v337, 1
  %v339 = vadd.f32 %v337, %v338
  %v340 = vadd.f32 %v211, %v215
  %v341 = vadd.f32 %v340, %v221
  %v342 = vadd.f32 %v341, %v225
  %v343 = vadd.f32 %v342, %v231
  %v344 = vadd.f32 %v343, %v235
  %v345 = vadd.f32 %v344, %v241
  %v346 = vadd.f32 %v345, %v245
  %v347 = vadd.f32 %v346, %v251
  %v348 = vadd.f32 %v347, %v255
  %v349 = vadd.f32 %v348, %v261
  %v350 = vadd.f32 %v349, %v265
  %v351 = vadd.f32 %v350, %v271
  %v352 = vadd.f32 %v351, %v275
  %v353 = vadd.f32 %v352, %v281
  %v354 = vadd.f32 %v353, %v285
  %v355 = vrot.slane %v354, 4
  %v356 = vadd.f32 %v354, %v355
  %v357 = vrot.slane %v356, 2
  %v358 = vadd.f32 %v356, %v357
  %v359 = vrot.slane %v358, 1
  %v360 = vadd.f32 %v358, %v359
  %v361 = vmul.f32 %v209, %v209
  %v362 = vmul.f32 %v211, %v211
  %v363 = vmul.f32 %v213, %v213
  %v364 = vmul.f32 %v215, %v215
  %v365 = vmul.f32 %v219, %v219
  %v366 = vmul.f32 %v221, %v221
  %v367 = vmul.f32 %v223, %v223
  %v368 = vmul.f32 %v225, %v225
  %v369 = vmul.f32 %v229, %v229
  %v370 = vmul.f32 %v231, %v231
  %v371 = vmul.f32 %v233, %v233
  %v372 = vmul.f32 %v235, %v235
  %v373 = vmul.f32 %v239, %v239
  %v374 = vmul.f32 %v241, %v241
  %v375 = vmul.f32 %v243, %v243
  %v376 = vmul.f32 %v245, %v245
  %v377 = vmul.f32 %v249, %v249
  %v378 = vmul.f32 %v251, %v251
  %v379 = vmul.f32 %v253, %v253
  %v380 = vmul.f32 %v255, %v255
  %v381 = vmul.f32 %v259, %v259
  %v382 = vmul.f32 %v261, %v261
  %v383 = vmul.f32 %v263, %v263
  %v384 = vmul.f32 %v265, %v265
  %v385 = vmul.f32 %v269, %v269
  %v386 = vmul.f32 %v271, %v271
  %v387 = vmul.f32 %v273, %v273
  %v388 = vmul.f32 %v275, %v275
  %v389 = vmul.f32 %v279, %v279
  %v390 = vmul.f32 %v281, %v281
  %v391 = vmul.f32 %v283, %v283
  %v392 = vmul.f32 %v285, %v285
  %v393 = vadd.f32 %v361, %v363
  %v394 = vadd.f32 %v393, %v365
  %v395 = vadd.f32 %v394, %v367
  %v396 = vadd.f32 %v395, %v369
  %v397 = vadd.f32 %v396, %v371
  %v398 = vadd.f32 %v397, %v373
  %v399 = vadd.f32 %v398, %v375
  %v400 = vadd.f32 %v399, %v377
  %v401 = vadd.f32 %v400, %v379
  %v402 = vadd.f32 %v401, %v381
  %v403 = vadd.f32 %v402, %v383
  %v404 = vadd.f32 %v403, %v385
  %v405 = vadd.f32 %v404, %v387
  %v406 = vadd.f32 %v405, %v389
  %v407 = vadd.f32 %v406, %v391
  %v408 = vrot.slane %v407, 4
  %v409 = vadd.f32 %v407, %v408
  %v410 = vrot.slane %v409, 2
  %v411 = vadd.f32 %v409, %v410
  %v412 = vrot.slane %v411, 1
  %v413 = vadd.f32 %v411, %v412
  %v414 = vadd.f32 %v362, %v364
  %v415 = vadd.f32 %v414, %v366
  %v416 = vadd.f32 %v415, %v368
  %v417 = vadd.f32 %v416, %v370
  %v418 = vadd.f32 %v417, %v372
  %v419 = vadd.f32 %v418, %v374
  %v420 = vadd.f32 %v419, %v376
  %v421 = vadd.f32 %v420, %v378
  %v422 = vadd.f32 %v421, %v380
  %v423 = vadd.f32 %v422, %v382
  %v424 = vadd.f32 %v423, %v384
  %v425 = vadd.f32 %v424, %v386
  %v426 = vadd.f32 %v425, %v388
  %v427 = vadd.f32 %v426, %v390
  %v428 = vadd.f32 %v427, %v392
  %v429 = vrot.slane %v428, 4
  %v430 = vadd.f32 %v428, %v429
  %v431 = vrot.slane %v430, 2
  %v432 = vadd.f32 %v430, %v431
  %v433 = vrot.slane %v432, 1
  %v434 = vadd.f32 %v432, %v433
  %v435 = vlaneseq
  %v436 = vshrl.u32 %v435, 7
  %vm437 = vcmp.eq.s32.totalorder %v436, 0
  %v438 = vsel %vm437, %v339, 0.0
  %v439 = vsel %vm437, %v360, 0.0
  %vm440 = vcmp.eq.s32.totalorder %v436, 1
  %v441 = vsel %vm440, %v413, 0.0
  %v442 = vsel %vm440, %v434, 0.0
  %v443 = vadd.f32 %v438, %v441
  %v444 = vadd.f32 %v439, %v442
  %445 = vst [vmem:[%s3] sm:$0xff] %v443
  %446 = vst [vmem:[%s3 + $0x8] sm:$0xff] %v444
  // Predicated region
  $region10: #{_lambda_.4} parent=0 // pred_check
    _
  $region11: #{_lambda_.4} parent=0 // pred_check_branch
    %448 = sbr.rel (0) target = $region13
  $region12: #{_lambda_.4} parent=0 // pred_region
    _
  $region13: #{_lambda_.4} parent=0 // pred_fallthru
    _
  // Predicated region
  $region14: #{_lambda_.4} parent=0 // pred_check
    _
  $region15: #{_lambda_.4} parent=0 // pred_check_branch
    %450 = sbr.rel (0) target = $region17
  $region16: #{_lambda_.4} parent=0 // pred_region
    _
  $region17: #{_lambda_.4} parent=0 // pred_fallthru
    _
  // Predicated region
  $region18: #{_lambda_.4} parent=0 // pred_check
    _
  $region19: #{_lambda_.4} parent=0 // pred_check_branch
    %452 = sbr.rel (0) target = $region21
  $region20: #{_lambda_.4} parent=0 // pred_region
    _
  $region21: #{_lambda_.4} parent=0 // pred_fallthru
    _
  // Predicated region
  $region22: #{_lambda_.4} parent=0 // pred_check
    _
  $region23: #{_lambda_.4} parent=0 // pred_check_branch
    %454 = sbr.rel (0) target = $region25
  $region24: #{_lambda_.4} parent=0 // pred_region
    _
  $region25: #{_lambda_.4} parent=0 // pred_fallthru
    _

// kernel: _lambda_.6
$region0: #{_lambda_.6}
  #allocation0 [shape = 'u32[]', space=smem, size = 0x4, offset = 0x4, fixed_abs, tag = 'smem constant byte address 0x4 - core index']
  #allocation1 [shape = 'u32[144,128]{1,0:T(1,128)}', space=vmem, size = 0x12000, scoped, tag = 'internal scratch']
  %s0 = inlined_call_operand.vmem [shape: bf16[128,128], index: 0, kind: input, shape index: {}]
  %s1 = inlined_call_operand.vmem [shape: bf16[128,128], index: 1, kind: input, shape index: {}]
  %s2 = inlined_call_operand.vmem [shape: f32[128,128], index: 2, kind: output, shape index: {0}]
  %s3 = inlined_call_operand.vmem [shape: f32[1,8,128], index: 3, kind: output, shape index: {1}]
  %4 = xla_tuple %s2, %s3
  %s5 = sld [smem:[#allocation0]]
  $region26: #{_lambda_.6} parent=0
    _
  %s7 = ssub.s32 1, %s5
  %s8 = scalar_select 0, %s7, %s5
  // Predicated region
  $region2: #{_lambda_.6} parent=0 // pred_check
    _
  $region3: #{_lambda_.6} parent=0 // pred_check_branch
    %10 = sbr.rel (0) target = $region5
  $region4: #{_lambda_.6} parent=0 // pred_region
    _
  $region5: #{_lambda_.6} parent=0 // pred_fallthru
    _
  // Predicated region
  $region6: #{_lambda_.6} parent=0 // pred_check
    _
  $region7: #{_lambda_.6} parent=0 // pred_check_branch
    %12 = sbr.rel (0) target = $region9
  $region8: #{_lambda_.6} parent=0 // pred_region
    _
  $region9: #{_lambda_.6} parent=0 // pred_fallthru
    _
  %v14 = vld [vmem:[%s0] sm:$0xf]
  %v15 = vld [vmem:[%s0 + $0x4] sm:$0xf]
  %v16 = vld [vmem:[%s0 + $0x8] sm:$0xf]
  %v17 = vld [vmem:[%s0 + $0xc] sm:$0xf]
  %v18 = vld [vmem:[%s0 + $0x10] sm:$0xf]
  %v19 = vld [vmem:[%s0 + $0x14] sm:$0xf]
  %v20 = vld [vmem:[%s0 + $0x18] sm:$0xf]
  %v21 = vld [vmem:[%s0 + $0x1c] sm:$0xf]
  %v22 = vld [vmem:[%s0 + $0x20] sm:$0xf]
  %v23 = vld [vmem:[%s0 + $0x24] sm:$0xf]
  %v24 = vld [vmem:[%s0 + $0x28] sm:$0xf]
  %v25 = vld [vmem:[%s0 + $0x2c] sm:$0xf]
  %v26 = vld [vmem:[%s0 + $0x30] sm:$0xf]
  %v27 = vld [vmem:[%s0 + $0x34] sm:$0xf]
  %v28 = vld [vmem:[%s0 + $0x38] sm:$0xf]
  %v29 = vld [vmem:[%s0 + $0x3c] sm:$0xf]
  %v30 = vld [vmem:[%s1] sm:$0xf]
  %v31 = vld [vmem:[%s1 + $0x4] sm:$0xf]
  %v32 = vld [vmem:[%s1 + $0x8] sm:$0xf]
  %v33 = vld [vmem:[%s1 + $0xc] sm:$0xf]
  %v34 = vld [vmem:[%s1 + $0x10] sm:$0xf]
  %v35 = vld [vmem:[%s1 + $0x14] sm:$0xf]
  %v36 = vld [vmem:[%s1 + $0x18] sm:$0xf]
  %v37 = vld [vmem:[%s1 + $0x1c] sm:$0xf]
  %v38 = vld [vmem:[%s1 + $0x20] sm:$0xf]
  %v39 = vld [vmem:[%s1 + $0x24] sm:$0xf]
  %v40 = vld [vmem:[%s1 + $0x28] sm:$0xf]
  %v41 = vld [vmem:[%s1 + $0x2c] sm:$0xf]
  %v42 = vld [vmem:[%s1 + $0x30] sm:$0xf]
  %v43 = vld [vmem:[%s1 + $0x34] sm:$0xf]
  %v44 = vld [vmem:[%s1 + $0x38] sm:$0xf]
  %v45 = vld [vmem:[%s1 + $0x3c] sm:$0xf]
  %v62 = vunpack.c.l.b16 %v14
  %v63 = vunpack.c.l.b16 %v15
  %v64 = vunpack.c.l.b16 %v16
  %v65 = vunpack.c.l.b16 %v17
  %v66 = vunpack.c.l.b16 %v18
  %v67 = vunpack.c.l.b16 %v19
  %v68 = vunpack.c.l.b16 %v20
  %v69 = vunpack.c.l.b16 %v21
  %v70 = vunpack.c.l.b16 %v22
  %v71 = vunpack.c.l.b16 %v23
  %v72 = vunpack.c.l.b16 %v24
  %v73 = vunpack.c.l.b16 %v25
  %v74 = vunpack.c.l.b16 %v26
  %v75 = vunpack.c.l.b16 %v27
  %v76 = vunpack.c.l.b16 %v28
  %v77 = vunpack.c.l.b16 %v29
  %v78 = vpack.c.b16 %v63, %v62
  %v79 = vpack.c.b16 %v65, %v64
  %v80 = vpack.c.b16 %v67, %v66
  %v81 = vpack.c.b16 %v69, %v68
  %v82 = vpack.c.b16 %v71, %v70
  %v83 = vpack.c.b16 %v73, %v72
  %v84 = vpack.c.b16 %v75, %v74
  %v85 = vpack.c.b16 %v77, %v76
  %v110 = vunpack.c.l.b16 %v30
  %v111 = vunpack.c.l.b16 %v31
  %v112 = vunpack.c.l.b16 %v32
  %v113 = vunpack.c.l.b16 %v33
  %v114 = vunpack.c.l.b16 %v34
  %v115 = vunpack.c.l.b16 %v35
  %v116 = vunpack.c.l.b16 %v36
  %v117 = vunpack.c.l.b16 %v37
  %v118 = vunpack.c.l.b16 %v38
  %v119 = vunpack.c.l.b16 %v39
  %v120 = vunpack.c.l.b16 %v40
  %v121 = vunpack.c.l.b16 %v41
  %v122 = vunpack.c.l.b16 %v42
  %v123 = vunpack.c.l.b16 %v43
  %v124 = vunpack.c.l.b16 %v44
  %v125 = vunpack.c.l.b16 %v45
  %v126 = vpack.c.b16 %v111, %v110
  %v127 = vpack.c.b16 %v113, %v112
  %v128 = vpack.c.b16 %v115, %v114
  %v129 = vpack.c.b16 %v117, %v116
  %v130 = vpack.c.b16 %v119, %v118
  %v131 = vpack.c.b16 %v121, %v120
  %v132 = vpack.c.b16 %v123, %v122
  %v133 = vpack.c.b16 %v125, %v124
  %142 = vmatprep.subr.bf16.mxu0 0
  %143 = vmatpush1.bf16.msra.mxu0 %v133
  %144 = vmatprep.subr.bf16.mxu0 0
  %145 = vmatpush1.bf16.msra.mxu0 %v132
  %146 = vmatprep.subr.bf16.mxu0 0
  %147 = vmatpush1.bf16.msra.mxu0 %v131
  %148 = vmatprep.subr.bf16.mxu0 0
  %149 = vmatpush1.bf16.msra.mxu0 %v130
  %150 = vmatprep.subr.bf16.mxu0 0
  %151 = vmatpush1.bf16.msra.mxu0 %v129
  %152 = vmatprep.subr.bf16.mxu0 0
  %153 = vmatpush1.bf16.msra.mxu0 %v128
  %154 = vmatprep.subr.bf16.mxu0 0
  %155 = vmatpush1.bf16.msra.mxu0 %v127
  %156 = vmatprep.subr.bf16.mxu0 0
  %157 = vmatpush1.bf16.msra.mxu0 %v126
  %158 = vmatprep.subr.bf16.mxu0 0
  %159 = vmatpush2.bf16.msra.mxu0 0
  %160 = vmatprep.subr.bf16.mxu0 0
  %161 = vmatpush2.bf16.msra.mxu0 0
  %162 = vmatprep.subr.bf16.mxu0 0
  %163 = vmatpush2.bf16.msra.mxu0 0
  %164 = vmatprep.subr.bf16.mxu0 0
  %165 = vmatpush2.bf16.msra.mxu0 0
  %166 = vmatprep.subr.bf16.mxu0 0
  %167 = vmatpush2.bf16.msra.mxu0 0
  %168 = vmatprep.subr.bf16.mxu0 0
  %169 = vmatpush2.bf16.msra.mxu0 0
  %170 = vmatprep.subr.bf16.mxu0 0
  %171 = vmatpush2.bf16.msra.mxu0 0
  %172 = vmatprep.subr.bf16.mxu0 0
  %173 = vmatpush2.bf16.msra.mxu0 0
  %174 = vmatprep.mubr.bf16.mxu0 0
  %175 = vmatmul.mubr.bf16.gmra.mxu0 %v78
  %v176 = vpop.f32.mrf.mxu0
  %v177 = vadd.f32 0.0, %v176
  %v178 = vpop.f32.mrf.mxu0
  %v179 = vpop.f32.mrf.mxu0
  %v180 = vadd.f32 0.0, %v179
  %v181 = vpop.f32.mrf.mxu0
  %182 = vmatprep.mubr.bf16.mxu0 0
  %183 = vmatmul.mubr.bf16.gmra.mxu0 %v79
  %v184 = vpop.f32.mrf.mxu0
  %v185 = vadd.f32 0.0, %v184
  %v186 = vpop.f32.mrf.mxu0
  %v187 = vpop.f32.mrf.mxu0
  %v188 = vadd.f32 0.0, %v187
  %v189 = vpop.f32.mrf.mxu0
  %190 = vmatprep.mubr.bf16.mxu0 0
  %191 = vmatmul.mubr.bf16.gmra.mxu0 %v80
  %v192 = vpop.f32.mrf.mxu0
  %v193 = vadd.f32 0.0, %v192
  %v194 = vpop.f32.mrf.mxu0
  %v195 = vpop.f32.mrf.mxu0
  %v196 = vadd.f32 0.0, %v195
  %v197 = vpop.f32.mrf.mxu0
  %198 = vmatprep.mubr.bf16.mxu0 0
  %199 = vmatmul.mubr.bf16.gmra.mxu0 %v81
  %v200 = vpop.f32.mrf.mxu0
  %v201 = vadd.f32 0.0, %v200
  %v202 = vpop.f32.mrf.mxu0
  %v203 = vpop.f32.mrf.mxu0
  %v204 = vadd.f32 0.0, %v203
  %v205 = vpop.f32.mrf.mxu0
  %206 = vmatprep.mubr.bf16.mxu0 0
  %207 = vmatmul.mubr.bf16.gmra.mxu0 %v82
  %v208 = vpop.f32.mrf.mxu0
  %v209 = vadd.f32 0.0, %v208
  %v210 = vpop.f32.mrf.mxu0
  %v211 = vpop.f32.mrf.mxu0
  %v212 = vadd.f32 0.0, %v211
  %v213 = vpop.f32.mrf.mxu0
  %214 = vmatprep.mubr.bf16.mxu0 0
  %215 = vmatmul.mubr.bf16.gmra.mxu0 %v83
  %v216 = vpop.f32.mrf.mxu0
  %v217 = vadd.f32 0.0, %v216
  %v218 = vpop.f32.mrf.mxu0
  %v219 = vpop.f32.mrf.mxu0
  %v220 = vadd.f32 0.0, %v219
  %v221 = vpop.f32.mrf.mxu0
  %222 = vmatprep.mubr.bf16.mxu0 0
  %223 = vmatmul.mubr.bf16.gmra.mxu0 %v84
  %v224 = vpop.f32.mrf.mxu0
  %v225 = vadd.f32 0.0, %v224
  %v226 = vpop.f32.mrf.mxu0
  %v227 = vpop.f32.mrf.mxu0
  %v228 = vadd.f32 0.0, %v227
  %v229 = vpop.f32.mrf.mxu0
  %230 = vmatprep.mubr.bf16.mxu0 0
  %231 = vmatmul.mubr.bf16.gmra.mxu0 %v85
  %v232 = vpop.f32.mrf.mxu0
  %v233 = vadd.f32 0.0, %v232
  %v234 = vpop.f32.mrf.mxu0
  %v235 = vpop.f32.mrf.mxu0
  %v236 = vadd.f32 0.0, %v235
  %v237 = vpop.f32.mrf.mxu0
  %238 = vdwg.mxu0
  %239 = vst [vmem:[%s2] sm:$0xff] %v177
  %240 = vst [vmem:[%s2 + $0x8] sm:$0xff] %v180
  %241 = vst [vmem:[%s2 + $0x10] sm:$0xff] %v185
  %242 = vst [vmem:[%s2 + $0x18] sm:$0xff] %v188
  %243 = vst [vmem:[%s2 + $0x20] sm:$0xff] %v193
  %244 = vst [vmem:[%s2 + $0x28] sm:$0xff] %v196
  %245 = vst [vmem:[%s2 + $0x30] sm:$0xff] %v201
  %246 = vst [vmem:[%s2 + $0x38] sm:$0xff] %v204
  %247 = vst [vmem:[%s2 + $0x40] sm:$0xff] %v209
  %248 = vst [vmem:[%s2 + $0x48] sm:$0xff] %v212
  %249 = vst [vmem:[%s2 + $0x50] sm:$0xff] %v217
  %250 = vst [vmem:[%s2 + $0x58] sm:$0xff] %v220
  %251 = vst [vmem:[%s2 + $0x60] sm:$0xff] %v225
  %252 = vst [vmem:[%s2 + $0x68] sm:$0xff] %v228
  %253 = vst [vmem:[%s2 + $0x70] sm:$0xff] %v233
  %254 = vst [vmem:[%s2 + $0x78] sm:$0xff] %v236
  %v255 = vadd.f32 %v177, %v180
  %v256 = vadd.f32 %v255, %v185
  %v257 = vadd.f32 %v256, %v188
  %v258 = vadd.f32 %v257, %v193
  %v259 = vadd.f32 %v258, %v196
  %v260 = vadd.f32 %v259, %v201
  %v261 = vadd.f32 %v260, %v204
  %v262 = vadd.f32 %v261, %v209
  %v263 = vadd.f32 %v262, %v212
  %v264 = vadd.f32 %v263, %v217
  %v265 = vadd.f32 %v264, %v220
  %v266 = vadd.f32 %v265, %v225
  %v267 = vadd.f32 %v266, %v228
  %v268 = vadd.f32 %v267, %v233
  %v269 = vadd.f32 %v268, %v236
  %v270 = vrot.slane %v269, 4
  %v271 = vadd.f32 %v269, %v270
  %v272 = vrot.slane %v271, 2
  %v273 = vadd.f32 %v271, %v272
  %v274 = vrot.slane %v273, 1
  %v275 = vadd.f32 %v273, %v274
  %v276 = vmul.f32 %v177, %v177
  %v277 = vmul.f32 %v180, %v180
  %v278 = vmul.f32 %v185, %v185
  %v279 = vmul.f32 %v188, %v188
  %v280 = vmul.f32 %v193, %v193
  %v281 = vmul.f32 %v196, %v196
  %v282 = vmul.f32 %v201, %v201
  %v283 = vmul.f32 %v204, %v204
  %v284 = vmul.f32 %v209, %v209
  %v285 = vmul.f32 %v212, %v212
  %v286 = vmul.f32 %v217, %v217
  %v287 = vmul.f32 %v220, %v220
  %v288 = vmul.f32 %v225, %v225
  %v289 = vmul.f32 %v228, %v228
  %v290 = vmul.f32 %v233, %v233
  %v291 = vmul.f32 %v236, %v236
  %v292 = vadd.f32 %v276, %v277
  %v293 = vadd.f32 %v292, %v278
  %v294 = vadd.f32 %v293, %v279
  %v295 = vadd.f32 %v294, %v280
  %v296 = vadd.f32 %v295, %v281
  %v297 = vadd.f32 %v296, %v282
  %v298 = vadd.f32 %v297, %v283
  %v299 = vadd.f32 %v298, %v284
  %v300 = vadd.f32 %v299, %v285
  %v301 = vadd.f32 %v300, %v286
  %v302 = vadd.f32 %v301, %v287
  %v303 = vadd.f32 %v302, %v288
  %v304 = vadd.f32 %v303, %v289
  %v305 = vadd.f32 %v304, %v290
  %v306 = vadd.f32 %v305, %v291
  %v307 = vrot.slane %v306, 4
  %v308 = vadd.f32 %v306, %v307
  %v309 = vrot.slane %v308, 2
  %v310 = vadd.f32 %v308, %v309
  %v311 = vrot.slane %v310, 1
  %v312 = vadd.f32 %v310, %v311
  %v313 = vlaneseq
  %v314 = vshrl.u32 %v313, 7
  %vm315 = vcmp.eq.s32.totalorder %v314, 0
  %v316 = vsel %vm315, %v275, 0.0
  %vm317 = vcmp.eq.s32.totalorder %v314, 1
  %v318 = vsel %vm317, %v312, 0.0
  %v319 = vadd.f32 %v316, %v318
  %320 = vst [vmem:[%s3] sm:$0xff] %v319
  // Predicated region
  $region10: #{_lambda_.6} parent=0 // pred_check
    _
  $region11: #{_lambda_.6} parent=0 // pred_check_branch
    %322 = sbr.rel (0) target = $region13
  $region12: #{_lambda_.6} parent=0 // pred_region
    _
  $region13: #{_lambda_.6} parent=0 // pred_fallthru
    _
  // Predicated region
  $region14: #{_lambda_.6} parent=0 // pred_check
    _
  $region15: #{_lambda_.6} parent=0 // pred_check_branch
    %324 = sbr.rel (0) target = $region17
  $region16: #{_lambda_.6} parent=0 // pred_region
    _
  $region17: #{_lambda_.6} parent=0 // pred_fallthru
    _
  // Predicated region
  $region18: #{_lambda_.6} parent=0 // pred_check
    _
  $region19: #{_lambda_.6} parent=0 // pred_check_branch
    %326 = sbr.rel (0) target = $region21
  $region20: #{_lambda_.6} parent=0 // pred_region
    _
  $region21: #{_lambda_.6} parent=0 // pred_fallthru
    _
  // Predicated region
  $region22: #{_lambda_.6} parent=0 // pred_check
    _
  $region23: #{_lambda_.6} parent=0 // pred_check_branch
    %328 = sbr.rel (0) target = $region25
  $region24: #{_lambda_.6} parent=0 // pred_region
    _
  $region25: #{_lambda_.6} parent=0 // pred_fallthru
    _

// kernel: _lambda_.7
$region0: #{_lambda_.7}
  #allocation0 [shape = 'u32[]', space=smem, size = 0x4, offset = 0x4, fixed_abs, tag = 'smem constant byte address 0x4 - core index']
  #allocation1 [shape = 'u32[144,128]{1,0:T(1,128)}', space=vmem, size = 0x12000, scoped, tag = 'internal scratch']
  %s0 = inlined_call_operand.vmem [shape: f32[128,128], index: 0, kind: input, shape index: {}]
  %s1 = inlined_call_operand.vmem [shape: f32[1,128], index: 1, kind: input, shape index: {}]
  %s2 = inlined_call_operand.vmem [shape: f32[1,128], index: 2, kind: input, shape index: {}]
  %s3 = inlined_call_operand.vmem [shape: f32[128,128], index: 3, kind: input, shape index: {}]
  %s4 = inlined_call_operand.vmem [shape: f32[128,128], index: 4, kind: output, shape index: {}]
  %s5 = sld [smem:[#allocation0]]
  $region26: #{_lambda_.7} parent=0
    _
  %s7 = ssub.s32 1, %s5
  %s8 = scalar_select 0, %s7, %s5
  // Predicated region
  $region2: #{_lambda_.7} parent=0 // pred_check
    _
  $region3: #{_lambda_.7} parent=0 // pred_check_branch
    %10 = sbr.rel (0) target = $region5
  $region4: #{_lambda_.7} parent=0 // pred_region
    _
  $region5: #{_lambda_.7} parent=0 // pred_fallthru
    _
  // Predicated region
  $region6: #{_lambda_.7} parent=0 // pred_check
    _
  $region7: #{_lambda_.7} parent=0 // pred_check_branch
    %12 = sbr.rel (0) target = $region9
  $region8: #{_lambda_.7} parent=0 // pred_region
    _
  $region9: #{_lambda_.7} parent=0 // pred_fallthru
    _
  // Predicated region
  $region10: #{_lambda_.7} parent=0 // pred_check
    _
  $region11: #{_lambda_.7} parent=0 // pred_check_branch
    %14 = sbr.rel (0) target = $region13
  $region12: #{_lambda_.7} parent=0 // pred_region
    _
  $region13: #{_lambda_.7} parent=0 // pred_fallthru
    _
  // Predicated region
  $region14: #{_lambda_.7} parent=0 // pred_check
    _
  $region15: #{_lambda_.7} parent=0 // pred_check_branch
    %16 = sbr.rel (0) target = $region17
  $region16: #{_lambda_.7} parent=0 // pred_region
    _
  $region17: #{_lambda_.7} parent=0 // pred_fallthru
    _
  %v17 = vld [vmem:[%s0] sm:$0xff]
  %v18 = vld [vmem:[%s0 + $0x8] sm:$0xff]
  %v19 = vld [vmem:[%s0 + $0x10] sm:$0xff]
  %v20 = vld [vmem:[%s0 + $0x18] sm:$0xff]
  %v21 = vld [vmem:[%s0 + $0x20] sm:$0xff]
  %v22 = vld [vmem:[%s0 + $0x28] sm:$0xff]
  %v23 = vld [vmem:[%s0 + $0x30] sm:$0xff]
  %v24 = vld [vmem:[%s0 + $0x38] sm:$0xff]
  %v25 = vld [vmem:[%s0 + $0x40] sm:$0xff]
  %v26 = vld [vmem:[%s0 + $0x48] sm:$0xff]
  %v27 = vld [vmem:[%s0 + $0x50] sm:$0xff]
  %v28 = vld [vmem:[%s0 + $0x58] sm:$0xff]
  %v29 = vld [vmem:[%s0 + $0x60] sm:$0xff]
  %v30 = vld [vmem:[%s0 + $0x68] sm:$0xff]
  %v31 = vld [vmem:[%s0 + $0x70] sm:$0xff]
  %v32 = vld [vmem:[%s0 + $0x78] sm:$0xff]
  %v33 = vld [vmem:[%s1] sm:$0x1]
  %v35 = vlaneseq
  %v36 = vshrl.u32 %v35, 7
  %v37 = vsub.s32 0, %v36
  %v38 = vrot.slane %v33, %v37
  %v40 = vmul.f32 %v17, %v38
  %v41 = vmul.f32 %v18, %v38
  %v42 = vmul.f32 %v19, %v38
  %v43 = vmul.f32 %v20, %v38
  %v44 = vmul.f32 %v21, %v38
  %v45 = vmul.f32 %v22, %v38
  %v46 = vmul.f32 %v23, %v38
  %v47 = vmul.f32 %v24, %v38
  %v48 = vmul.f32 %v25, %v38
  %v49 = vmul.f32 %v26, %v38
  %v50 = vmul.f32 %v27, %v38
  %v51 = vmul.f32 %v28, %v38
  %v52 = vmul.f32 %v29, %v38
  %v53 = vmul.f32 %v30, %v38
  %v54 = vmul.f32 %v31, %v38
  %v55 = vmul.f32 %v32, %v38
  %v56 = vld [vmem:[%s2] sm:$0x1]
  %v58 = vlaneseq
  %v59 = vshrl.u32 %v58, 7
  %v60 = vsub.s32 0, %v59
  %v61 = vrot.slane %v56, %v60
  %v63 = vadd.f32 %v40, %v61
  %v64 = vadd.f32 %v41, %v61
  %v65 = vadd.f32 %v42, %v61
  %v66 = vadd.f32 %v43, %v61
  %v67 = vadd.f32 %v44, %v61
  %v68 = vadd.f32 %v45, %v61
  %v69 = vadd.f32 %v46, %v61
  %v70 = vadd.f32 %v47, %v61
  %v71 = vadd.f32 %v48, %v61
  %v72 = vadd.f32 %v49, %v61
  %v73 = vadd.f32 %v50, %v61
  %v74 = vadd.f32 %v51, %v61
  %v75 = vadd.f32 %v52, %v61
  %v76 = vadd.f32 %v53, %v61
  %v77 = vadd.f32 %v54, %v61
  %v78 = vadd.f32 %v55, %v61
  %v79 = vld [vmem:[%s3] sm:$0xff]
  %v80 = vld [vmem:[%s3 + $0x8] sm:$0xff]
  %v81 = vld [vmem:[%s3 + $0x10] sm:$0xff]
  %v82 = vld [vmem:[%s3 + $0x18] sm:$0xff]
  %v83 = vld [vmem:[%s3 + $0x20] sm:$0xff]
  %v84 = vld [vmem:[%s3 + $0x28] sm:$0xff]
  %v85 = vld [vmem:[%s3 + $0x30] sm:$0xff]
  %v86 = vld [vmem:[%s3 + $0x38] sm:$0xff]
  %v87 = vld [vmem:[%s3 + $0x40] sm:$0xff]
  %v88 = vld [vmem:[%s3 + $0x48] sm:$0xff]
  %v89 = vld [vmem:[%s3 + $0x50] sm:$0xff]
  %v90 = vld [vmem:[%s3 + $0x58] sm:$0xff]
  %v91 = vld [vmem:[%s3 + $0x60] sm:$0xff]
  %v92 = vld [vmem:[%s3 + $0x68] sm:$0xff]
  %v93 = vld [vmem:[%s3 + $0x70] sm:$0xff]
  %v94 = vld [vmem:[%s3 + $0x78] sm:$0xff]
  %v95 = vadd.f32 %v63, %v79
  %v96 = vadd.f32 %v64, %v80
  %v97 = vadd.f32 %v65, %v81
  %v98 = vadd.f32 %v66, %v82
  %v99 = vadd.f32 %v67, %v83
  %v100 = vadd.f32 %v68, %v84
  %v101 = vadd.f32 %v69, %v85
  %v102 = vadd.f32 %v70, %v86
  %v103 = vadd.f32 %v71, %v87
  %v104 = vadd.f32 %v72, %v88
  %v105 = vadd.f32 %v73, %v89
  %v106 = vadd.f32 %v74, %v90
  %v107 = vadd.f32 %v75, %v91
  %v108 = vadd.f32 %v76, %v92
  %v109 = vadd.f32 %v77, %v93
  %v110 = vadd.f32 %v78, %v94
  %v111 = vmax.f32 %v95, 0.0
  %v112 = vmax.f32 %v96, 0.0
  %v113 = vmax.f32 %v97, 0.0
  %v114 = vmax.f32 %v98, 0.0
  %v115 = vmax.f32 %v99, 0.0
  %v116 = vmax.f32 %v100, 0.0
  %v117 = vmax.f32 %v101, 0.0
  %v118 = vmax.f32 %v102, 0.0
  %v119 = vmax.f32 %v103, 0.0
  %v120 = vmax.f32 %v104, 0.0
  %v121 = vmax.f32 %v105, 0.0
  %v122 = vmax.f32 %v106, 0.0
  %v123 = vmax.f32 %v107, 0.0
  %v124 = vmax.f32 %v108, 0.0
  %v125 = vmax.f32 %v109, 0.0
  %v126 = vmax.f32 %v110, 0.0
  %127 = vst [vmem:[%s4] sm:$0xff] %v111
  %128 = vst [vmem:[%s4 + $0x8] sm:$0xff] %v112
  %129 = vst [vmem:[%s4 + $0x10] sm:$0xff] %v113
  %130 = vst [vmem:[%s4 + $0x18] sm:$0xff] %v114
  %131 = vst [vmem:[%s4 + $0x20] sm:$0xff] %v115
  %132 = vst [vmem:[%s4 + $0x28] sm:$0xff] %v116
  %133 = vst [vmem:[%s4 + $0x30] sm:$0xff] %v117
  %134 = vst [vmem:[%s4 + $0x38] sm:$0xff] %v118
  %135 = vst [vmem:[%s4 + $0x40] sm:$0xff] %v119
  %136 = vst [vmem:[%s4 + $0x48] sm:$0xff] %v120
  %137 = vst [vmem:[%s4 + $0x50] sm:$0xff] %v121
  %138 = vst [vmem:[%s4 + $0x58] sm:$0xff] %v122
  %139 = vst [vmem:[%s4 + $0x60] sm:$0xff] %v123
  %140 = vst [vmem:[%s4 + $0x68] sm:$0xff] %v124
  %141 = vst [vmem:[%s4 + $0x70] sm:$0xff] %v125
  %142 = vst [vmem:[%s4 + $0x78] sm:$0xff] %v126
  // Predicated region
  $region18: #{_lambda_.7} parent=0 // pred_check
    _
  $region19: #{_lambda_.7} parent=0 // pred_check_branch
    %144 = sbr.rel (0) target = $region21
  $region20: #{_lambda_.7} parent=0 // pred_region
    _
  $region21: #{_lambda_.7} parent=0 // pred_fallthru
    _
  // Predicated region
  $region22: #{_lambda_.7} parent=0 // pred_check
    _
  $region23: #{_lambda_.7} parent=0 // pred_check_branch
    %146 = sbr.rel (0) target = $region25
  $region24: #{_lambda_.7} parent=0 // pred_region
    _
  $region25: #{_lambda_.7} parent=0 // pred_fallthru
    _

</llo_original>
